<compile_context>
chip_gen: v7x
topology: tpu7x:2x2x1
jax: 0.10.0
libtpu: 0.0.40
codegen_flags: <defaults>
</compile_context>

<pallas_src>
import functools
import numpy as np
import jax
import jax.numpy as jnp
from jax.experimental import pallas as pl
from jax.experimental.pallas import tpu as pltpu

VMEM = pltpu.MemorySpace.VMEM
LANE = 128
SUBLANE = 8


def _round_up(v, m):
    return (v + m - 1) // m * m


# --------------------------- fused Pallas kernel ------------------------------

def rgin_fused_kernel(x_ref, adj_ref, pool_ref, ncount_ref,
                      w1a_ref, b1a_ref, w1b_ref, b1b_ref,      # first_h (BN folded)
                      wrel_cat_ref, wroot_ref, rbias_ref,      # RGCNConv
                      w2a_ref, b2a_ref, w2b_ref, b2b_ref,      # nns[0] (BN folded)
                      lin0_w_ref, lin0_b_ref,                  # linears[0] (lane-padded)
                      lin1_w_ref, lin1_b_ref,                  # linears[1] (lane-padded)
                      o_ref, *, num_relations, nhid, num_classes):
    f32 = jnp.float32

    # ---- layer 0: first_h = Linear+BN+ReLU + Linear+BN+ReLU (BN pre-folded) ----
    h0 = jnp.maximum(
        jnp.dot(x_ref[...], w1a_ref[...], preferred_element_type=f32) + b1a_ref[...], 0.0)
    h0 = jnp.maximum(
        jnp.dot(h0, w1b_ref[...], preferred_element_type=f32) + b1b_ref[...], 0.0)

    # ---- layer 1: RGCNConv --------------------------------------------------
    # all relational messages in ONE wide matmul: [Np, R*H]
    msg_all = jnp.dot(h0, wrel_cat_ref[...], preferred_element_type=f32)
    hc = jnp.dot(h0, wroot_ref[...], preferred_element_type=f32) + rbias_ref[...]
    for r in range(num_relations):   # static unroll, small relation count
        hc = hc + jnp.dot(adj_ref[r], msg_all[:, r * nhid:(r + 1) * nhid],
                          preferred_element_type=f32)

    # nns[0] MLP (BN pre-folded)
    h1 = jnp.maximum(
        jnp.dot(hc, w2a_ref[...], preferred_element_type=f32) + b2a_ref[...], 0.0)
    h1 = jnp.maximum(
        jnp.dot(h1, w2b_ref[...], preferred_element_type=f32) + b2b_ref[...], 0.0)

    # ---- classifier heads: pool first, then project (sum-pool is linear) -----
    #   out  = pool @ (h0 @ W0 + 1·b0)  + (pool @ h1) @ W1 + b1
    #        = (pool @ h0) @ W0 + n_g·b0 + (pool @ h1) @ W1 + b1
    pooled0 = jnp.dot(pool_ref[...], h0, preferred_element_type=f32)   # [Gp, H]
    pooled1 = jnp.dot(pool_ref[...], h1, preferred_element_type=f32)   # [Gp, H]
    logits = (jnp.dot(pooled0, lin0_w_ref[...], preferred_element_type=f32)
              + ncount_ref[...] * lin0_b_ref[...]
              + jnp.dot(pooled1, lin1_w_ref[...], preferred_element_type=f32)
              + lin1_b_ref[...])                                        # [Gp, Cp]

    # ---- masked log_softmax over the lane-padded class dimension -------------
    lane = jax.lax.broadcasted_iota(jnp.int32, logits.shape, 1)
    masked = jnp.where(lane < num_classes, logits, -jnp.inf)
    m = jnp.max(masked, axis=-1, keepdims=True)
    lse = jnp.log(jnp.sum(jnp.exp(masked - m), axis=-1, keepdims=True)) + m
    o_ref[...] = masked - lse


def rgin_forward(prep, x_pad, adj, pool_t, ncount, num_graphs):
    """Single fused pallas_call; returns [num_graphs, num_classes] log-probs."""
    g_pad, c_pad = pool_t.shape[0], prep["lin0_w"].shape[1]
    kern = functools.partial(
        rgin_fused_kernel,
        num_relations=prep["num_relations"],
        nhid=prep["nhid"],
        num_classes=prep["num_classes"],
    )
    args = (x_pad, adj, pool_t, ncount,
            prep["w1a"], prep["b1a"], prep["w1b"], prep["b1b"],
            prep["wrel_cat"], prep["wroot"], prep["rbias"],
            prep["w2a"], prep["b2a"], prep["w2b"], prep["b2b"],
            prep["lin0_w"], prep["lin0_b"],
            prep["lin1_w"], prep["lin1_b"])
    vspec = pl.BlockSpec(memory_space=VMEM)
    out = pl.pallas_call(
        kern,
        out_shape=jax.ShapeDtypeStruct((g_pad, c_pad), jnp.float32),
        in_specs=[vspec] * len(args),
        out_specs=vspec,
        compiler_params=pltpu.CompilerParams(vmem_limit_bytes=32 * 1024 * 1024),
    )(*args)
    return out[:num_graphs, :prep["num_classes"]]


# --------------------------- host-side preparation ----------------------------

def bn_fold(gamma, beta, running_mean, running_var, eps=1e-5):
    scale = gamma / jnp.sqrt(running_var + eps)
    shift = beta - running_mean * scale
    return scale, shift


def fold_linear_bn(w, b, scale, shift):
    """y = (x @ w + b) * scale + shift  ==  x @ (w*scale) + (b*scale + shift)."""
    return w * scale, b * scale + shift


def prepare_params(params, num_classes):
    """Fold BN into linears, concat relation weights, lane-pad classifier heads."""
    nhid = params["rgcn_wroot"].shape[0]
    num_relations = params["rgcn_wrel"].shape[0]
    c_pad = _round_up(num_classes, LANE)

    def pad_head(w, b):
        w_p = jnp.zeros((w.shape[0], c_pad), jnp.float32).at[:, :num_classes].set(w)
        b_p = jnp.zeros((1, c_pad), jnp.float32).at[:, :num_classes].set(b)
        return w_p, b_p

    w1, b1, s1, t1, w2, b2, s2, t2 = params["first_h"]
    w1a, b1a = fold_linear_bn(w1, b1, s1, t1)
    w1b, b1b = fold_linear_bn(w2, b2, s2, t2)

    w3, b3, s3, t3, w4, b4, s4, t4 = params["nn1"]
    w2a, b2a = fold_linear_bn(w3, b3, s3, t3)
    w2b, b2b = fold_linear_bn(w4, b4, s4, t4)

    lin0_w, lin0_b = pad_head(params["lin0_w"], params["lin0_b"])
    lin1_w, lin1_b = pad_head(params["lin1_w"], params["lin1_b"])

    # concat relation weights along the output axis -> one wide message matmul
    wrel_cat = jnp.concatenate(
        [params["rgcn_wrel"][r] for r in range(num_relations)], axis=1)  # [H, R*H]

    return dict(
        num_relations=num_relations, nhid=nhid, num_classes=num_classes,
        w1a=w1a, b1a=b1a, w1b=w1b, b1b=b1b,
        w2a=w2a, b2a=b2a, w2b=w2b, b2b=b2b,
        lin0_w=lin0_w, lin0_b=lin0_b, lin1_w=lin1_w, lin1_b=lin1_b,
        wrel_cat=wrel_cat, wroot=params["rgcn_wroot"], rbias=params["rgcn_bias"],
    )


def preprocess_graph(x, edge_index, edge_attr, batch, num_graphs, num_relations):
    """Done once per batch (outside the kernel path): dense relational adjacency,
    sublane-padded node features, a sublane-padded pooling matrix and per-graph
    node counts (needed to fold the layer-0 classifier bias under sum-pooling)."""
    n = x.shape[0]
    n_pad = _round_up(n, SUBLANE)
    g_pad = _round_up(num_graphs, SUBLANE)

    edge_type = jnp.argmax(edge_attr, axis=1)            # .max(dim=1).indices
    src, dst = edge_index[0], edge_index[1]               # flow: source -> target
    adj = jnp.zeros((num_relations, n_pad, n_pad), jnp.float32)
    adj = adj.at[edge_type, dst, src].add(1.0)

    x_pad = jnp.zeros((n_pad, x.shape[1]), jnp.float32).at[:n, :].set(x)

    # padded nodes get an out-of-range graph id -> all-zero one_hot column
    batch_pad = jnp.full((n_pad,), g_pad, jnp.int32).at[:n].set(batch)
    pool_t = jax.nn.one_hot(batch_pad, g_pad, dtype=jnp.float32).T   # [Gp, Np]
    ncount = jnp.sum(pool_t, axis=1, keepdims=True)                  # [Gp, 1]
    return x_pad, adj, pool_t, ncount


# --------------------------- parameter init -----------------------------------

def init_params(key, num_features, nhid, num_classes, num_relations):
    ks = list(jax.random.split(key, 8))

    def lin(k, fin, fout):
        kw, kb = jax.random.split(k)
        w = jax.random.normal(kw, (fin, fout), jnp.float32) * 0.1
        b = jax.random.normal(kb, (1, fout), jnp.float32) * 0.1
        return w, b

    def mlp(k, fin, fout):
        k1, k2, k3, k4, k5, k6 = jax.random.split(k, 6)
        w1, b1 = lin(k1, fin, fout)
        w2, b2 = lin(k2, fout, fout)
        g1 = 1.0 + 0.1 * jax.random.normal(k3, (1, fout), jnp.float32)
        be1 = 0.1 * jax.random.normal(k4, (1, fout), jnp.float32)
        g2 = 1.0 + 0.1 * jax.random.normal(k5, (1, fout), jnp.float32)
        be2 = 0.1 * jax.random.normal(k6, (1, fout), jnp.float32)
        zero = jnp.zeros((1, fout), jnp.float32)
        one = jnp.ones((1, fout), jnp.float32)
        s1, t1 = bn_fold(g1, be1, zero, one)   # eval-mode BN, folded to scale/shift
        s2, t2 = bn_fold(g2, be2, zero, one)
        return (w1, b1, s1, t1, w2, b2, s2, t2)

    params = {}
    params["first_h"] = mlp(ks[0], num_features, nhid)
    params["lin0_w"], params["lin0_b"] = lin(ks[1], nhid, num_classes)
    params["nn1"] = mlp(ks[2], nhid, nhid)
    params["rgcn_wrel"] = jax.random.normal(ks[3], (num_relations, nhid, nhid), jnp.float32) * 0.1
    params["rgcn_wroot"] = jax.random.normal(ks[4], (nhid, nhid), jnp.float32) * 0.1
    params["rgcn_bias"] = jax.random.normal(ks[5], (1, nhid), jnp.float32) * 0.1
    params["lin1_w"], params["lin1_b"] = lin(ks[6], nhid, num_classes)
    return params


# --------------------------- pure-JAX reference --------------------------------
# Uses the RAW (unfolded, unpadded) parameters and the written-as-in-PyTorch order
# (project-then-pool for layer 0), so it also validates the BN fold, the relation
# weight concatenation and the pool-before-project rewrite.

def ref_forward(params, x, edge_index, edge_attr, batch, num_graphs, num_relations):
    def mlp(x, w1, b1, s1, t1, w2, b2, s2, t2):
        h = jnp.maximum((x @ w1 + b1) * s1 + t1, 0.0)
        return jnp.maximum((h @ w2 + b2) * s2 + t2, 0.0)

    n = x.shape[0]
    edge_type = jnp.argmax(edge_attr, axis=1)
    src, dst = edge_index[0], edge_index[1]
    adj = jnp.zeros((num_relations, n, n), jnp.float32).at[edge_type, dst, src].add(1.0)
    pool_t = jax.nn.one_hot(batch, num_graphs, dtype=jnp.float32).T

    h = mlp(x, *params["first_h"])
    out = pool_t @ (h @ params["lin0_w"] + params["lin0_b"])

    hc = h @ params["rgcn_wroot"] + params["rgcn_bias"]
    for r in range(num_relations):
        hc = hc + adj[r] @ (h @ params["rgcn_wrel"][r])
    h = mlp(hc, *params["nn1"])
    out = out + (pool_t @ h) @ params["lin1_w"] + params["lin1_b"]

    return jax.nn.log_softmax(out, axis=-1)


# --------------------------- main ----------------------------------------------

if __name__ == "__main__":
    num_features = 16
    nhid = 32
    num_classes = 4
    num_relations = 3
    num_nodes = 24
    num_edges = 48
    num_graphs = 2

    key = jax.random.PRNGKey(0)
    kx, ke, kt, kp = jax.random.split(key, 4)

    x = jax.random.normal(kx, (num_nodes, num_features), jnp.float32)
    edge_index = jax.random.randint(ke, (2, num_edges), 0, num_nodes, dtype=jnp.int32)
    edge_attr = jax.nn.one_hot(
        jax.random.randint(kt, (num_edges,), 0, num_relations, dtype=jnp.int32),
        num_relations, dtype=jnp.float32)
    batch = jnp.concatenate([
        jnp.zeros((num_nodes // 2,), jnp.int32),
        jnp.ones((num_nodes - num_nodes // 2,), jnp.int32)])

    params = init_params(kp, num_features, nhid, num_classes, num_relations)

    # one-time host-side prep (outside the per-forward kernel path)
    prep = prepare_params(params, num_classes)
    x_pad, adj, pool_t, ncount = preprocess_graph(
        x, edge_index, edge_attr, batch, num_graphs, num_relations)

    out = rgin_forward(prep, x_pad, adj, pool_t, ncount, num_graphs)
    out = jax.block_until_ready(out)

    ref = ref_forward(params, x, edge_index, edge_attr, batch, num_graphs, num_relations)
    np.testing.assert_allclose(np.asarray(out), np.asarray(ref), rtol=1e-4, atol=1e-4)

    print("KERNEL_OK")
</pallas_src>

<mosaic_0001>
module attributes {stable_mosaic.version = 11 : i64} {
  func.func @rgin_fused_kernel(%arg0: memref<24x16xf32, #tpu.memory_space<vmem>>, %arg1: memref<3x24x24xf32, #tpu.memory_space<vmem>>, %arg2: memref<8x24xf32, #tpu.memory_space<vmem>>, %arg3: memref<8x1xf32, #tpu.memory_space<vmem>>, %arg4: memref<16x32xf32, #tpu.memory_space<vmem>>, %arg5: memref<1x32xf32, #tpu.memory_space<vmem>>, %arg6: memref<32x32xf32, #tpu.memory_space<vmem>>, %arg7: memref<1x32xf32, #tpu.memory_space<vmem>>, %arg8: memref<32x96xf32, #tpu.memory_space<vmem>>, %arg9: memref<32x32xf32, #tpu.memory_space<vmem>>, %arg10: memref<1x32xf32, #tpu.memory_space<vmem>>, %arg11: memref<32x32xf32, #tpu.memory_space<vmem>>, %arg12: memref<1x32xf32, #tpu.memory_space<vmem>>, %arg13: memref<32x32xf32, #tpu.memory_space<vmem>>, %arg14: memref<1x32xf32, #tpu.memory_space<vmem>>, %arg15: memref<32x128xf32, #tpu.memory_space<vmem>>, %arg16: memref<1x128xf32, #tpu.memory_space<vmem>>, %arg17: memref<32x128xf32, #tpu.memory_space<vmem>>, %arg18: memref<1x128xf32, #tpu.memory_space<vmem>>, %arg19: memref<8x128xf32, #tpu.memory_space<vmem>>) attributes {dimension_semantics = [], scalar_prefetch = 0 : i64, scratch_operands = 0 : i64, tpu.core_type = #tpu.core_type<tc>} {
    %c0 = arith.constant 0 : index
    %c0_0 = arith.constant 0 : index
    %0 = vector.load %arg0[%c0, %c0_0] : memref<24x16xf32, #tpu.memory_space<vmem>>, vector<24x16xf32>
    %c0_1 = arith.constant 0 : index
    %c0_2 = arith.constant 0 : index
    %1 = vector.load %arg4[%c0_1, %c0_2] : memref<16x32xf32, #tpu.memory_space<vmem>>, vector<16x32xf32>
    %cst = arith.constant dense<0.000000e+00> : vector<24x32xf32>
    %2 = tpu.matmul %0, %1, %cst {dimension_numbers = #tpu.dot_dimension_numbers<[1], [0], [0], [1], [0, 0, 1, 1], [], []>} : vector<24x16xf32>, vector<16x32xf32>, vector<24x32xf32> -> vector<24x32xf32>
    %c0_3 = arith.constant 0 : index
    %c0_4 = arith.constant 0 : index
    %3 = vector.load %arg5[%c0_3, %c0_4] : memref<1x32xf32, #tpu.memory_space<vmem>>, vector<1x32xf32>
    %4 = vector.broadcast %3 : vector<1x32xf32> to vector<24x32xf32>
    %5 = arith.addf %2, %4 : vector<24x32xf32>
    %cst_5 = arith.constant 0.000000e+00 : f32
    %6 = vector.broadcast %cst_5 : f32 to vector<24x32xf32>
    %7 = arith.maximumf %5, %6 : vector<24x32xf32>
    %c0_6 = arith.constant 0 : index
    %c0_7 = arith.constant 0 : index
    %8 = vector.load %arg6[%c0_6, %c0_7] : memref<32x32xf32, #tpu.memory_space<vmem>>, vector<32x32xf32>
    %cst_8 = arith.constant dense<0.000000e+00> : vector<24x32xf32>
    %9 = tpu.matmul %7, %8, %cst_8 {dimension_numbers = #tpu.dot_dimension_numbers<[1], [0], [0], [1], [0, 0, 1, 1], [], []>} : vector<24x32xf32>, vector<32x32xf32>, vector<24x32xf32> -> vector<24x32xf32>
    %c0_9 = arith.constant 0 : index
    %c0_10 = arith.constant 0 : index
    %10 = vector.load %arg7[%c0_9, %c0_10] : memref<1x32xf32, #tpu.memory_space<vmem>>, vector<1x32xf32>
    %11 = vector.broadcast %10 : vector<1x32xf32> to vector<24x32xf32>
    %12 = arith.addf %9, %11 : vector<24x32xf32>
    %cst_11 = arith.constant 0.000000e+00 : f32
    %13 = vector.broadcast %cst_11 : f32 to vector<24x32xf32>
    %14 = arith.maximumf %12, %13 : vector<24x32xf32>
    %c0_12 = arith.constant 0 : index
    %c0_13 = arith.constant 0 : index
    %15 = vector.load %arg8[%c0_12, %c0_13] : memref<32x96xf32, #tpu.memory_space<vmem>>, vector<32x96xf32>
    %cst_14 = arith.constant dense<0.000000e+00> : vector<24x96xf32>
    %16 = tpu.matmul %14, %15, %cst_14 {dimension_numbers = #tpu.dot_dimension_numbers<[1], [0], [0], [1], [0, 0, 1, 1], [], []>} : vector<24x32xf32>, vector<32x96xf32>, vector<24x96xf32> -> vector<24x96xf32>
    %c0_15 = arith.constant 0 : index
    %c0_16 = arith.constant 0 : index
    %17 = vector.load %arg9[%c0_15, %c0_16] : memref<32x32xf32, #tpu.memory_space<vmem>>, vector<32x32xf32>
    %cst_17 = arith.constant dense<0.000000e+00> : vector<24x32xf32>
    %18 = tpu.matmul %14, %17, %cst_17 {dimension_numbers = #tpu.dot_dimension_numbers<[1], [0], [0], [1], [0, 0, 1, 1], [], []>} : vector<24x32xf32>, vector<32x32xf32>, vector<24x32xf32> -> vector<24x32xf32>
    %c0_18 = arith.constant 0 : index
    %c0_19 = arith.constant 0 : index
    %19 = vector.load %arg10[%c0_18, %c0_19] : memref<1x32xf32, #tpu.memory_space<vmem>>, vector<1x32xf32>
    %20 = vector.broadcast %19 : vector<1x32xf32> to vector<24x32xf32>
    %21 = arith.addf %18, %20 : vector<24x32xf32>
    %c0_20 = arith.constant 0 : index
    %c0_21 = arith.constant 0 : index
    %c0_22 = arith.constant 0 : index
    %22 = vector.load %arg1[%c0_20, %c0_21, %c0_22] : memref<3x24x24xf32, #tpu.memory_space<vmem>>, vector<1x24x24xf32>
    %23 = vector.shape_cast %22 : vector<1x24x24xf32> to vector<24x24xf32>
    %24 = vector.extract_strided_slice %16 {offsets = [0, 0], sizes = [24, 32], strides = [1, 1]} : vector<24x96xf32> to vector<24x32xf32>
    %cst_23 = arith.constant dense<0.000000e+00> : vector<24x32xf32>
    %25 = tpu.matmul %23, %24, %cst_23 {dimension_numbers = #tpu.dot_dimension_numbers<[1], [0], [0], [1], [0, 0, 1, 1], [], []>} : vector<24x24xf32>, vector<24x32xf32>, vector<24x32xf32> -> vector<24x32xf32>
    %26 = arith.addf %21, %25 : vector<24x32xf32>
    %c1 = arith.constant 1 : index
    %c0_24 = arith.constant 0 : index
    %c0_25 = arith.constant 0 : index
    %27 = vector.load %arg1[%c1, %c0_24, %c0_25] : memref<3x24x24xf32, #tpu.memory_space<vmem>>, vector<1x24x24xf32>
    %28 = vector.shape_cast %27 : vector<1x24x24xf32> to vector<24x24xf32>
    %29 = vector.extract_strided_slice %16 {offsets = [0, 32], sizes = [24, 32], strides = [1, 1]} : vector<24x96xf32> to vector<24x32xf32>
    %cst_26 = arith.constant dense<0.000000e+00> : vector<24x32xf32>
    %30 = tpu.matmul %28, %29, %cst_26 {dimension_numbers = #tpu.dot_dimension_numbers<[1], [0], [0], [1], [0, 0, 1, 1], [], []>} : vector<24x24xf32>, vector<24x32xf32>, vector<24x32xf32> -> vector<24x32xf32>
    %31 = arith.addf %26, %30 : vector<24x32xf32>
    %c2 = arith.constant 2 : index
    %c0_27 = arith.constant 0 : index
    %c0_28 = arith.constant 0 : index
    %32 = vector.load %arg1[%c2, %c0_27, %c0_28] : memref<3x24x24xf32, #tpu.memory_space<vmem>>, vector<1x24x24xf32>
    %33 = vector.shape_cast %32 : vector<1x24x24xf32> to vector<24x24xf32>
    %34 = vector.extract_strided_slice %16 {offsets = [0, 64], sizes = [24, 32], strides = [1, 1]} : vector<24x96xf32> to vector<24x32xf32>
    %cst_29 = arith.constant dense<0.000000e+00> : vector<24x32xf32>
    %35 = tpu.matmul %33, %34, %cst_29 {dimension_numbers = #tpu.dot_dimension_numbers<[1], [0], [0], [1], [0, 0, 1, 1], [], []>} : vector<24x24xf32>, vector<24x32xf32>, vector<24x32xf32> -> vector<24x32xf32>
    %36 = arith.addf %31, %35 : vector<24x32xf32>
    %c0_30 = arith.constant 0 : index
    %c0_31 = arith.constant 0 : index
    %37 = vector.load %arg11[%c0_30, %c0_31] : memref<32x32xf32, #tpu.memory_space<vmem>>, vector<32x32xf32>
    %cst_32 = arith.constant dense<0.000000e+00> : vector<24x32xf32>
    %38 = tpu.matmul %36, %37, %cst_32 {dimension_numbers = #tpu.dot_dimension_numbers<[1], [0], [0], [1], [0, 0, 1, 1], [], []>} : vector<24x32xf32>, vector<32x32xf32>, vector<24x32xf32> -> vector<24x32xf32>
    %c0_33 = arith.constant 0 : index
    %c0_34 = arith.constant 0 : index
    %39 = vector.load %arg12[%c0_33, %c0_34] : memref<1x32xf32, #tpu.memory_space<vmem>>, vector<1x32xf32>
    %40 = vector.broadcast %39 : vector<1x32xf32> to vector<24x32xf32>
    %41 = arith.addf %38, %40 : vector<24x32xf32>
    %cst_35 = arith.constant 0.000000e+00 : f32
    %42 = vector.broadcast %cst_35 : f32 to vector<24x32xf32>
    %43 = arith.maximumf %41, %42 : vector<24x32xf32>
    %c0_36 = arith.constant 0 : index
    %c0_37 = arith.constant 0 : index
    %44 = vector.load %arg13[%c0_36, %c0_37] : memref<32x32xf32, #tpu.memory_space<vmem>>, vector<32x32xf32>
    %cst_38 = arith.constant dense<0.000000e+00> : vector<24x32xf32>
    %45 = tpu.matmul %43, %44, %cst_38 {dimension_numbers = #tpu.dot_dimension_numbers<[1], [0], [0], [1], [0, 0, 1, 1], [], []>} : vector<24x32xf32>, vector<32x32xf32>, vector<24x32xf32> -> vector<24x32xf32>
    %c0_39 = arith.constant 0 : index
    %c0_40 = arith.constant 0 : index
    %46 = vector.load %arg14[%c0_39, %c0_40] : memref<1x32xf32, #tpu.memory_space<vmem>>, vector<1x32xf32>
    %47 = vector.broadcast %46 : vector<1x32xf32> to vector<24x32xf32>
    %48 = arith.addf %45, %47 : vector<24x32xf32>
    %cst_41 = arith.constant 0.000000e+00 : f32
    %49 = vector.broadcast %cst_41 : f32 to vector<24x32xf32>
    %50 = arith.maximumf %48, %49 : vector<24x32xf32>
    %c0_42 = arith.constant 0 : index
    %c0_43 = arith.constant 0 : index
    %51 = vector.load %arg2[%c0_42, %c0_43] : memref<8x24xf32, #tpu.memory_space<vmem>>, vector<8x24xf32>
    %cst_44 = arith.constant dense<0.000000e+00> : vector<8x32xf32>
    %52 = tpu.matmul %51, %14, %cst_44 {dimension_numbers = #tpu.dot_dimension_numbers<[1], [0], [0], [1], [0, 0, 1, 1], [], []>} : vector<8x24xf32>, vector<24x32xf32>, vector<8x32xf32> -> vector<8x32xf32>
    %c0_45 = arith.constant 0 : index
    %c0_46 = arith.constant 0 : index
    %53 = vector.load %arg2[%c0_45, %c0_46] : memref<8x24xf32, #tpu.memory_space<vmem>>, vector<8x24xf32>
    %cst_47 = arith.constant dense<0.000000e+00> : vector<8x32xf32>
    %54 = tpu.matmul %53, %50, %cst_47 {dimension_numbers = #tpu.dot_dimension_numbers<[1], [0], [0], [1], [0, 0, 1, 1], [], []>} : vector<8x24xf32>, vector<24x32xf32>, vector<8x32xf32> -> vector<8x32xf32>
    %c0_48 = arith.constant 0 : index
    %c0_49 = arith.constant 0 : index
    %55 = vector.load %arg15[%c0_48, %c0_49] : memref<32x128xf32, #tpu.memory_space<vmem>>, vector<32x128xf32>
    %cst_50 = arith.constant dense<0.000000e+00> : vector<8x128xf32>
    %56 = tpu.matmul %52, %55, %cst_50 {dimension_numbers = #tpu.dot_dimension_numbers<[1], [0], [0], [1], [0, 0, 1, 1], [], []>} : vector<8x32xf32>, vector<32x128xf32>, vector<8x128xf32> -> vector<8x128xf32>
    %c0_51 = arith.constant 0 : index
    %c0_52 = arith.constant 0 : index
    %57 = vector.load %arg3[%c0_51, %c0_52] : memref<8x1xf32, #tpu.memory_space<vmem>>, vector<8x1xf32>
    %c0_53 = arith.constant 0 : index
    %c0_54 = arith.constant 0 : index
    %58 = vector.load %arg16[%c0_53, %c0_54] : memref<1x128xf32, #tpu.memory_space<vmem>>, vector<1x128xf32>
    %59 = vector.broadcast %57 : vector<8x1xf32> to vector<8x128xf32>
    %60 = vector.broadcast %58 : vector<1x128xf32> to vector<8x128xf32>
    %61 = arith.mulf %59, %60 : vector<8x128xf32>
    %62 = arith.addf %56, %61 : vector<8x128xf32>
    %c0_55 = arith.constant 0 : index
    %c0_56 = arith.constant 0 : index
    %63 = vector.load %arg17[%c0_55, %c0_56] : memref<32x128xf32, #tpu.memory_space<vmem>>, vector<32x128xf32>
    %cst_57 = arith.constant dense<0.000000e+00> : vector<8x128xf32>
    %64 = tpu.matmul %54, %63, %cst_57 {dimension_numbers = #tpu.dot_dimension_numbers<[1], [0], [0], [1], [0, 0, 1, 1], [], []>} : vector<8x32xf32>, vector<32x128xf32>, vector<8x128xf32> -> vector<8x128xf32>
    %65 = arith.addf %62, %64 : vector<8x128xf32>
    %c0_58 = arith.constant 0 : index
    %c0_59 = arith.constant 0 : index
    %66 = vector.load %arg18[%c0_58, %c0_59] : memref<1x128xf32, #tpu.memory_space<vmem>>, vector<1x128xf32>
    %67 = vector.broadcast %66 : vector<1x128xf32> to vector<8x128xf32>
    %68 = arith.addf %65, %67 : vector<8x128xf32>
    %69 = tpu.iota {dimensions = array<i32: 1>} : vector<8x128xi32>
    %c4_i32 = arith.constant 4 : i32
    %70 = vector.broadcast %c4_i32 : i32 to vector<8x128xi32>
    %71 = arith.cmpi slt, %69, %70 : vector<8x128xi32>
    %cst_60 = arith.constant 0xFF800000 : f32
    %72 = vector.broadcast %cst_60 : f32 to vector<8x128xf32>
    %73 = arith.select %71, %68, %72 : vector<8x128xi1>, vector<8x128xf32>
    %cst_61 = arith.constant dense<0xFF800000> : vector<8xf32>
    %74 = vector.multi_reduction <maximumf>, %73, %cst_61 [1] : vector<8x128xf32> to vector<8xf32>
    %75 = vector.shape_cast %74 : vector<8xf32> to vector<8x1xf32>
    %76 = vector.broadcast %75 : vector<8x1xf32> to vector<8x128xf32>
    %77 = arith.subf %73, %76 : vector<8x128xf32>
    %78 = math.exp %77 : vector<8x128xf32>
    %cst_62 = arith.constant dense<0.000000e+00> : vector<8xf32>
    %79 = vector.multi_reduction <add>, %78, %cst_62 [1] : vector<8x128xf32> to vector<8xf32>
    %80 = vector.shape_cast %79 : vector<8xf32> to vector<8x1xf32>
    %81 = math.log %80 : vector<8x1xf32>
    %82 = arith.addf %81, %75 : vector<8x1xf32>
    %83 = vector.broadcast %82 : vector<8x1xf32> to vector<8x128xf32>
    %84 = arith.subf %73, %83 : vector<8x128xf32>
    %c0_63 = arith.constant 0 : index
    %c0_64 = arith.constant 0 : index
    %85 = vector.load %arg19[%c0_63, %c0_64] : memref<8x128xf32, #tpu.memory_space<vmem>>, vector<8x128xf32>
    tpu.vector_store %arg19[%c0_63, %c0_64], %84 {strides = array<i32>} : memref<8x128xf32, #tpu.memory_space<vmem>>, vector<8x128xf32>,
    return
  }
}

</mosaic_0001>

<llo_original>
// kernel: tpu_custom_call.1
$region0: #{tpu_custom_call.1}
  #allocation0 [shape = 'u32[]', space=smem, size = 0x4, offset = 0x4, fixed_abs, tag = 'smem constant byte address 0x4 - core index']
  #allocation1 [shape = 'u32[144,128]{1,0:T(1,128)}', space=vmem, size = 0x12000, scoped, tag = 'internal scratch']
  %s0 = inlined_call_operand.vmem [shape: f32[24,16], index: 0, kind: input, shape index: {}]
  %s1 = inlined_call_operand.hbm [shape: f32[3,24,24], index: 1, kind: input, shape index: {}]
  %s2 = inlined_call_operand.hbm [shape: f32[8,24], index: 2, kind: input, shape index: {}]
  %s3 = inlined_call_operand.vmem [shape: f32[8,1], index: 3, kind: input, shape index: {}]
  %s4 = inlined_call_operand.hbm [shape: f32[16,32], index: 4, kind: input, shape index: {}]
  %s5 = inlined_call_operand.vmem [shape: f32[1,32], index: 5, kind: input, shape index: {}]
  %s6 = inlined_call_operand.vmem [shape: f32[32,32], index: 6, kind: input, shape index: {}]
  %s7 = inlined_call_operand.vmem [shape: f32[1,32], index: 7, kind: input, shape index: {}]
  %s8 = inlined_call_operand.vmem [shape: f32[32,96], index: 8, kind: input, shape index: {}]
  %s9 = inlined_call_operand.hbm [shape: f32[32,32], index: 9, kind: input, shape index: {}]
  %s10 = inlined_call_operand.hbm [shape: f32[1,32], index: 10, kind: input, shape index: {}]
  %s11 = inlined_call_operand.hbm [shape: f32[32,32], index: 11, kind: input, shape index: {}]
  %s12 = inlined_call_operand.hbm [shape: f32[1,32], index: 12, kind: input, shape index: {}]
  %s13 = inlined_call_operand.vmem [shape: f32[32,32], index: 13, kind: input, shape index: {}]
  %s14 = inlined_call_operand.vmem [shape: f32[1,32], index: 14, kind: input, shape index: {}]
  %s15 = inlined_call_operand.hbm [shape: f32[32,128], index: 15, kind: input, shape index: {}]
  %s16 = inlined_call_operand.vmem [shape: f32[1,128], index: 16, kind: input, shape index: {}]
  %s17 = inlined_call_operand.hbm [shape: f32[32,128], index: 17, kind: input, shape index: {}]
  %s18 = inlined_call_operand.vmem [shape: f32[1,128], index: 18, kind: input, shape index: {}]
  %s19 = inlined_call_operand.hbm [shape: f32[8,128], index: 19, kind: output, shape index: {}]
  %s20 = sld [smem:[#allocation0]]
  $region122: #{tpu_custom_call.1} parent=0
    _
  %s22 = ssub.s32 1, %s20
  %s23 = scalar_select 0, %s22, %s20
  $region1: #{tpu_custom_call.1} parent=0
    #allocation2 [shape = 'u8[36864]{0}', space=vmem, size = 0x9000, scoped, tag = 'input window, operand 1, single buffered']
    #allocation3 [shape = 's32[1]{0}', space=sflag, size = 0x4, scoped, tag = 'scoped memory for tpu_custom_call.1']
    #allocation4 [shape = 's32[1]{0}', space=sflag, size = 0x4, scoped, tag = 'scoped memory for tpu_custom_call.1']
    #allocation5 [shape = 'u8[4096]{0}', space=vmem, size = 0x1000, scoped, tag = 'input window, operand 2, single buffered']
    #allocation6 [shape = 's32[1]{0}', space=sflag, size = 0x4, scoped, tag = 'scoped memory for tpu_custom_call.1']
    #allocation7 [shape = 'u8[8192]{0}', space=vmem, size = 0x2000, scoped, tag = 'input window, operand 4, single buffered']
    #allocation8 [shape = 'u8[16384]{0}', space=vmem, size = 0x4000, scoped, tag = 'input window, operand 9, single buffered']
    #allocation9 [shape = 's32[1]{0}', space=sflag, size = 0x4, scoped, tag = 'scoped memory for tpu_custom_call.1']
    #allocation10 [shape = 'u8[512]{0}', space=vmem, size = 0x400, scoped, tag = 'input window, operand 10, single buffered']
    #allocation11 [shape = 'u8[16384]{0}', space=vmem, size = 0x4000, scoped, tag = 'input window, operand 11, single buffered']
    #allocation12 [shape = 's32[1]{0}', space=sflag, size = 0x4, scoped, tag = 'scoped memory for tpu_custom_call.1']
    #allocation13 [shape = 'u8[512]{0}', space=vmem, size = 0x400, scoped, tag = 'input window, operand 12, single buffered']
    #allocation14 [shape = 'u8[16384]{0}', space=vmem, size = 0x4000, scoped, tag = 'input window, operand 15, single buffered']
    #allocation15 [shape = 's32[1]{0}', space=sflag, size = 0x4, scoped, tag = 'scoped memory for tpu_custom_call.1']
    #allocation16 [shape = 'u8[16384]{0}', space=vmem, size = 0x4000, scoped, tag = 'input window, operand 17, single buffered']
    #allocation17 [shape = 'u8[4096]{0}', space=vmem, size = 0x1000, scoped, tag = 'output window, operand 0, single buffered']
    %24 = vsyncpa [#allocation3], 0
    %25 = vsyncpa [#allocation6], 0
    %26 = vsyncpa [#allocation9], 0
    %27 = vsyncpa [#allocation12], 0
    %28 = vsyncpa [#allocation15], 0
    %29 = vsyncpa [#allocation4], 0
    // Predicated region
    $region2: #{tpu_custom_call.1} parent=1 // pred_check
      _
    $region3: #{tpu_custom_call.1} parent=1 // pred_check_branch
      %31 = sbr.rel (0) target = $region5
    $region4: #{tpu_custom_call.1} parent=1 // pred_region
      _
    $region5: #{tpu_custom_call.1} parent=1 // pred_fallthru
      _
    // Predicated region
    $region6: #{tpu_custom_call.1} parent=1 // pred_check
      _
    $region7: #{tpu_custom_call.1} parent=1 // pred_check_branch
      %33 = sbr.rel (0) target = $region9
    $region8: #{tpu_custom_call.1} parent=1 // pred_region
      %s35 = ssub.s32 1152, 1152
      %36 = vsyncadd [#allocation3], %s35
      %s37 = sshll.u32 [#allocation2], 4
      %s38 = int_to_ptr.vmem [resolvable:$true] %s37
      %43 = dma.hbm_to_vmem [thread:$0]  %s1, 1152, %s38, [#allocation3], 128, 128, 8
    $region9: #{tpu_custom_call.1} parent=1 // pred_fallthru
      _
    // Predicated region
    $region10: #{tpu_custom_call.1} parent=1 // pred_check
      _
    $region11: #{tpu_custom_call.1} parent=1 // pred_check_branch
      %45 = sbr.rel (0) target = $region13
    $region12: #{tpu_custom_call.1} parent=1 // pred_region
      %s47 = ssub.s32 128, 128
      %48 = vsyncadd [#allocation6], %s47
      %s50 = sshll.u32 [#allocation5], 4
      %s51 = int_to_ptr.vmem [resolvable:$true] %s50
      %53 = dma.hbm_to_vmem [thread:$0]  %s2, 128, %s51, [#allocation6]
    $region13: #{tpu_custom_call.1} parent=1 // pred_fallthru
      _
    // Predicated region
    $region14: #{tpu_custom_call.1} parent=1 // pred_check
      _
    $region15: #{tpu_custom_call.1} parent=1 // pred_check_branch
      %55 = sbr.rel (0) target = $region17
    $region16: #{tpu_custom_call.1} parent=1 // pred_region
      _
    $region17: #{tpu_custom_call.1} parent=1 // pred_fallthru
      _
    // Predicated region
    $region18: #{tpu_custom_call.1} parent=1 // pred_check
      _
    $region19: #{tpu_custom_call.1} parent=1 // pred_check_branch
      %57 = sbr.rel (0) target = $region21
    $region20: #{tpu_custom_call.1} parent=1 // pred_region
      %s59 = ssub.s32 256, 256
      %60 = vsyncadd [#allocation6], %s59
      %s61 = sshll.u32 [#allocation7], 4
      %s62 = int_to_ptr.vmem [resolvable:$true] %s61
      %67 = dma.hbm_to_vmem [thread:$0]  %s4, 256, %s62, [#allocation6], 128, 128, 8
    $region21: #{tpu_custom_call.1} parent=1 // pred_fallthru
      _
    // Predicated region
    $region22: #{tpu_custom_call.1} parent=1 // pred_check
      _
    $region23: #{tpu_custom_call.1} parent=1 // pred_check_branch
      %69 = sbr.rel (0) target = $region25
    $region24: #{tpu_custom_call.1} parent=1 // pred_region
      _
    $region25: #{tpu_custom_call.1} parent=1 // pred_fallthru
      _
    // Predicated region
    $region26: #{tpu_custom_call.1} parent=1 // pred_check
      _
    $region27: #{tpu_custom_call.1} parent=1 // pred_check_branch
      %71 = sbr.rel (0) target = $region29
    $region28: #{tpu_custom_call.1} parent=1 // pred_region
      _
    $region29: #{tpu_custom_call.1} parent=1 // pred_fallthru
      _
    // Predicated region
    $region30: #{tpu_custom_call.1} parent=1 // pred_check
      _
    $region31: #{tpu_custom_call.1} parent=1 // pred_check_branch
      %73 = sbr.rel (0) target = $region33
    $region32: #{tpu_custom_call.1} parent=1 // pred_region
      _
    $region33: #{tpu_custom_call.1} parent=1 // pred_fallthru
      _
    // Predicated region
    $region34: #{tpu_custom_call.1} parent=1 // pred_check
      _
    $region35: #{tpu_custom_call.1} parent=1 // pred_check_branch
      %75 = sbr.rel (0) target = $region37
    $region36: #{tpu_custom_call.1} parent=1 // pred_region
      _
    $region37: #{tpu_custom_call.1} parent=1 // pred_fallthru
      _
    // Predicated region
    $region38: #{tpu_custom_call.1} parent=1 // pred_check
      _
    $region39: #{tpu_custom_call.1} parent=1 // pred_check_branch
      %77 = sbr.rel (0) target = $region41
    $region40: #{tpu_custom_call.1} parent=1 // pred_region
      %s79 = ssub.s32 512, 512
      %80 = vsyncadd [#allocation9], %s79
      %s81 = sshll.u32 [#allocation8], 4
      %s82 = int_to_ptr.vmem [resolvable:$true] %s81
      %87 = dma.hbm_to_vmem [thread:$0]  %s9, 512, %s82, [#allocation9], 128, 128, 8
    $region41: #{tpu_custom_call.1} parent=1 // pred_fallthru
      _
    // Predicated region
    $region42: #{tpu_custom_call.1} parent=1 // pred_check
      _
    $region43: #{tpu_custom_call.1} parent=1 // pred_check_branch
      %89 = sbr.rel (0) target = $region45
    $region44: #{tpu_custom_call.1} parent=1 // pred_region
      %s91 = ssub.s32 16, 16
      %92 = vsyncadd [#allocation9], %s91
      %s94 = sshll.u32 [#allocation10], 4
      %s95 = int_to_ptr.vmem [resolvable:$true] %s94
      %97 = dma.hbm_to_vmem [thread:$0]  %s10, 16, %s95, [#allocation9]
    $region45: #{tpu_custom_call.1} parent=1 // pred_fallthru
      _
    // Predicated region
    $region46: #{tpu_custom_call.1} parent=1 // pred_check
      _
    $region47: #{tpu_custom_call.1} parent=1 // pred_check_branch
      %99 = sbr.rel (0) target = $region49
    $region48: #{tpu_custom_call.1} parent=1 // pred_region
      %s101 = ssub.s32 512, 512
      %102 = vsyncadd [#allocation12], %s101
      %s103 = sshll.u32 [#allocation11], 4
      %s104 = int_to_ptr.vmem [resolvable:$true] %s103
      %109 = dma.hbm_to_vmem [thread:$0]  %s11, 512, %s104, [#allocation12], 128, 128, 8
    $region49: #{tpu_custom_call.1} parent=1 // pred_fallthru
      _
    // Predicated region
    $region50: #{tpu_custom_call.1} parent=1 // pred_check
      _
    $region51: #{tpu_custom_call.1} parent=1 // pred_check_branch
      %111 = sbr.rel (0) target = $region53
    $region52: #{tpu_custom_call.1} parent=1 // pred_region
      %s113 = ssub.s32 16, 16
      %114 = vsyncadd [#allocation12], %s113
      %s116 = sshll.u32 [#allocation13], 4
      %s117 = int_to_ptr.vmem [resolvable:$true] %s116
      %119 = dma.hbm_to_vmem [thread:$0]  %s12, 16, %s117, [#allocation12]
    $region53: #{tpu_custom_call.1} parent=1 // pred_fallthru
      _
    // Predicated region
    $region54: #{tpu_custom_call.1} parent=1 // pred_check
      _
    $region55: #{tpu_custom_call.1} parent=1 // pred_check_branch
      %121 = sbr.rel (0) target = $region57
    $region56: #{tpu_custom_call.1} parent=1 // pred_region
      _
    $region57: #{tpu_custom_call.1} parent=1 // pred_fallthru
      _
    // Predicated region
    $region58: #{tpu_custom_call.1} parent=1 // pred_check
      _
    $region59: #{tpu_custom_call.1} parent=1 // pred_check_branch
      %123 = sbr.rel (0) target = $region61
    $region60: #{tpu_custom_call.1} parent=1 // pred_region
      _
    $region61: #{tpu_custom_call.1} parent=1 // pred_fallthru
      _
    // Predicated region
    $region62: #{tpu_custom_call.1} parent=1 // pred_check
      _
    $region63: #{tpu_custom_call.1} parent=1 // pred_check_branch
      %125 = sbr.rel (0) target = $region65
    $region64: #{tpu_custom_call.1} parent=1 // pred_region
      %s127 = ssub.s32 512, 512
      %128 = vsyncadd [#allocation15], %s127
      %s129 = sshll.u32 [#allocation14], 4
      %s130 = int_to_ptr.vmem [resolvable:$true] %s129
      %135 = dma.hbm_to_vmem [thread:$0]  %s15, 512, %s130, [#allocation15], 128, 128, 8
    $region65: #{tpu_custom_call.1} parent=1 // pred_fallthru
      _
    // Predicated region
    $region66: #{tpu_custom_call.1} parent=1 // pred_check
      _
    $region67: #{tpu_custom_call.1} parent=1 // pred_check_branch
      %137 = sbr.rel (0) target = $region69
    $region68: #{tpu_custom_call.1} parent=1 // pred_region
      _
    $region69: #{tpu_custom_call.1} parent=1 // pred_fallthru
      _
    // Predicated region
    $region70: #{tpu_custom_call.1} parent=1 // pred_check
      _
    $region71: #{tpu_custom_call.1} parent=1 // pred_check_branch
      %139 = sbr.rel (0) target = $region73
    $region72: #{tpu_custom_call.1} parent=1 // pred_region
      %s141 = ssub.s32 512, 512
      %142 = vsyncadd [#allocation15], %s141
      %s143 = sshll.u32 [#allocation16], 4
      %s144 = int_to_ptr.vmem [resolvable:$true] %s143
      %149 = dma.hbm_to_vmem [thread:$0]  %s17, 512, %s144, [#allocation15], 128, 128, 8
    $region73: #{tpu_custom_call.1} parent=1 // pred_fallthru
      _
    // Predicated region
    $region74: #{tpu_custom_call.1} parent=1 // pred_check
      _
    $region75: #{tpu_custom_call.1} parent=1 // pred_check_branch
      %151 = sbr.rel (0) target = $region77
    $region76: #{tpu_custom_call.1} parent=1 // pred_region
      _
    $region77: #{tpu_custom_call.1} parent=1 // pred_fallthru
      _
    // Predicated region
    $region78: #{tpu_custom_call.1} parent=1 // pred_check
      _
    $region79: #{tpu_custom_call.1} parent=1 // pred_check_branch
      %153 = sbr.rel (0) target = $region81
    $region80: #{tpu_custom_call.1} parent=1 // pred_region
      %154 = dma.done [#allocation3], 1152
    $region81: #{tpu_custom_call.1} parent=1 // pred_fallthru
      _
    // Predicated region
    $region82: #{tpu_custom_call.1} parent=1 // pred_check
      _
    $region83: #{tpu_custom_call.1} parent=1 // pred_check_branch
      %156 = sbr.rel (0) target = $region85
    $region84: #{tpu_custom_call.1} parent=1 // pred_region
      %157 = dma.done [#allocation6], 128
    $region85: #{tpu_custom_call.1} parent=1 // pred_fallthru
      _
    // Predicated region
    $region86: #{tpu_custom_call.1} parent=1 // pred_check
      _
    $region87: #{tpu_custom_call.1} parent=1 // pred_check_branch
      %159 = sbr.rel (0) target = $region89
    $region88: #{tpu_custom_call.1} parent=1 // pred_region
      %160 = dma.done [#allocation6], 256
    $region89: #{tpu_custom_call.1} parent=1 // pred_fallthru
      _
    // Predicated region
    $region90: #{tpu_custom_call.1} parent=1 // pred_check
      _
    $region91: #{tpu_custom_call.1} parent=1 // pred_check_branch
      %162 = sbr.rel (0) target = $region93
    $region92: #{tpu_custom_call.1} parent=1 // pred_region
      %163 = dma.done [#allocation9], 512
    $region93: #{tpu_custom_call.1} parent=1 // pred_fallthru
      _
    // Predicated region
    $region94: #{tpu_custom_call.1} parent=1 // pred_check
      _
    $region95: #{tpu_custom_call.1} parent=1 // pred_check_branch
      %165 = sbr.rel (0) target = $region97
    $region96: #{tpu_custom_call.1} parent=1 // pred_region
      %166 = dma.done [#allocation9], 16
    $region97: #{tpu_custom_call.1} parent=1 // pred_fallthru
      _
    // Predicated region
    $region98: #{tpu_custom_call.1} parent=1 // pred_check
      _
    $region99: #{tpu_custom_call.1} parent=1 // pred_check_branch
      %168 = sbr.rel (0) target = $region101
    $region100: #{tpu_custom_call.1} parent=1 // pred_region
      %169 = dma.done [#allocation12], 512
    $region101: #{tpu_custom_call.1} parent=1 // pred_fallthru
      _
    // Predicated region
    $region102: #{tpu_custom_call.1} parent=1 // pred_check
      _
    $region103: #{tpu_custom_call.1} parent=1 // pred_check_branch
      %171 = sbr.rel (0) target = $region105
    $region104: #{tpu_custom_call.1} parent=1 // pred_region
      %172 = dma.done [#allocation12], 16
    $region105: #{tpu_custom_call.1} parent=1 // pred_fallthru
      _
    // Predicated region
    $region106: #{tpu_custom_call.1} parent=1 // pred_check
      _
    $region107: #{tpu_custom_call.1} parent=1 // pred_check_branch
      %174 = sbr.rel (0) target = $region109
    $region108: #{tpu_custom_call.1} parent=1 // pred_region
      %175 = dma.done [#allocation15], 512
    $region109: #{tpu_custom_call.1} parent=1 // pred_fallthru
      _
    // Predicated region
    $region110: #{tpu_custom_call.1} parent=1 // pred_check
      _
    $region111: #{tpu_custom_call.1} parent=1 // pred_check_branch
      %177 = sbr.rel (0) target = $region113
    $region112: #{tpu_custom_call.1} parent=1 // pred_region
      %178 = dma.done [#allocation15], 512
    $region113: #{tpu_custom_call.1} parent=1 // pred_fallthru
      _
    %v179 = vld [vmem:[%s0] sm:$0xff]
    %v180 = vld [vmem:[%s0 + $0x8] sm:$0xff]
    %v181 = vld [vmem:[%s0 + $0x10] sm:$0xff]
    %v182 = vld [vmem:[#allocation7] sm:$0xff]
    %v183 = vld [vmem:[#allocation7 + $0x8] sm:$0xff]
    %v184 = vld [vmem:[%s5] sm:$0x1]
    %v186 = vlaneseq
    %v187 = vshrl.u32 %v186, 7
    %v188 = vsub.s32 0, %v187
    %v189 = vrot.slane %v184, %v188
    %vm191 = vcmask 130048
    %v193 = vsel %vm191, %v179, 0
    %v196 = vsel %vm191, %v180, 0
    %v199 = vsel %vm191, %v181, 0
    %201 = vmatprep.subr.mxu0 0.0
    %202 = vmatpush1.msra.mxu0 %v182
    %203 = vmatprep.subr.mxu0 0.0
    %204 = vmatpush1.msra.mxu0 %v183
    %205 = vmatprep.subr.mxu0 0.0
    %206 = vmatpush1.msra.mxu0 0.0
    %207 = vmatprep.subr.mxu0 0.0
    %208 = vmatpush1.msra.mxu0 0.0
    %209 = vmatprep.subr.mxu0 0.0
    %210 = vmatpush1.msra.mxu0 0.0
    %211 = vmatprep.subr.mxu0 0.0
    %212 = vmatpush1.msra.mxu0 0.0
    %213 = vmatprep.subr.mxu0 0.0
    %214 = vmatpush1.msra.mxu0 0.0
    %215 = vmatprep.subr.mxu0 0.0
    %216 = vmatpush1.msra.mxu0 0.0
    %217 = vmatprep.subr.mxu0 0.0
    %218 = vmatpush1.msra.mxu0 0.0
    %219 = vmatprep.subr.mxu0 0.0
    %220 = vmatpush1.msra.mxu0 0.0
    %221 = vmatprep.subr.mxu0 0.0
    %222 = vmatpush1.msra.mxu0 0.0
    %223 = vmatprep.subr.mxu0 0.0
    %224 = vmatpush1.msra.mxu0 0.0
    %225 = vmatprep.subr.mxu0 0.0
    %226 = vmatpush1.msra.mxu0 0.0
    %227 = vmatprep.subr.mxu0 0.0
    %228 = vmatpush1.msra.mxu0 0.0
    %229 = vmatprep.subr.mxu0 0.0
    %230 = vmatpush1.msra.mxu0 0.0
    %231 = vmatprep.subr.mxu0 0.0
    %232 = vmatpush1.msra.mxu0 0.0
    %233 = vmatprep.subr.mxu0 0.0
    %234 = vmatpush1.msra.mxu0 0.0
    %235 = vmatprep.subr.mxu0 0.0
    %236 = vmatpush1.msra.mxu0 0.0
    %237 = vmatprep.subr.mxu0 0.0
    %238 = vmatpush1.msra.mxu0 0.0
    %239 = vmatprep.subr.mxu0 0.0
    %240 = vmatpush1.msra.mxu0 0.0
    %241 = vmatprep.subr.mxu0 0.0
    %242 = vmatpush1.msra.mxu0 0.0
    %243 = vmatprep.subr.mxu0 0.0
    %244 = vmatpush1.msra.mxu0 0.0
    %245 = vmatprep.subr.mxu0 0.0
    %246 = vmatpush1.msra.mxu0 0.0
    %247 = vmatprep.subr.mxu0 0.0
    %248 = vmatpush1.msra.mxu0 0.0
    %249 = vmatprep.subr.mxu0 0.0
    %250 = vmatpush1.msra.mxu0 0.0
    %251 = vmatprep.subr.mxu0 0.0
    %252 = vmatpush1.msra.mxu0 0.0
    %253 = vmatprep.subr.mxu0 0.0
    %254 = vmatpush1.msra.mxu0 0.0
    %255 = vmatprep.subr.mxu0 0.0
    %256 = vmatpush1.msra.mxu0 0.0
    %257 = vmatprep.subr.mxu0 0.0
    %258 = vmatpush1.msra.mxu0 0.0
    %259 = vmatprep.subr.mxu0 0.0
    %260 = vmatpush1.msra.mxu0 0.0
    %261 = vmatprep.subr.mxu0 0.0
    %262 = vmatpush1.msra.mxu0 0.0
    %263 = vmatprep.subr.mxu0 0.0
    %264 = vmatpush1.msra.mxu0 0.0
    %265 = vmatprep.mubr.f32.mxu0 0.0
    %266 = vmatmul.mubr.f32.gmra.mrb[0].mxu0 %v193
    %v267 = vpop.f32.mrb[0].mxu0
    %v268 = vadd.f32 %v189, %v267
    %v269 = vpop.f32.mrb[0].mxu0
    %270 = vmatprep.mubr.f32.mxu0 0.0
    %271 = vmatmul.mubr.f32.gmra.mrb[0].mxu0 %v196
    %v272 = vpop.f32.mrb[0].mxu0
    %v273 = vadd.f32 %v189, %v272
    %v274 = vpop.f32.mrb[0].mxu0
    %275 = vmatprep.mubr.f32.mxu0 0.0
    %276 = vmatmul.mubr.f32.gmra.mrb[0].mxu0 %v199
    %v277 = vpop.f32.mrb[0].mxu0
    %v278 = vadd.f32 %v189, %v277
    %v279 = vpop.f32.mrb[0].mxu0
    %280 = vdwg.mxu0
    %v281 = vmax.f32 %v268, 0.0
    %v282 = vmax.f32 %v273, 0.0
    %v283 = vmax.f32 %v278, 0.0
    %v284 = vld [vmem:[%s6] sm:$0xff]
    %v285 = vld [vmem:[%s6 + $0x8] sm:$0xff]
    %v286 = vld [vmem:[%s6 + $0x10] sm:$0xff]
    %v287 = vld [vmem:[%s6 + $0x18] sm:$0xff]
    %v288 = vld [vmem:[%s7] sm:$0x1]
    %v290 = vlaneseq
    %v291 = vshrl.u32 %v290, 7
    %v292 = vsub.s32 0, %v291
    %v293 = vrot.slane %v288, %v292
    %vm295 = vcmask 261120
    %v297 = vsel %vm295, %v281, 0
    %v300 = vsel %vm295, %v282, 0
    %v303 = vsel %vm295, %v283, 0
    %305 = vmatprep.subr.mxu0 0.0
    %306 = vmatpush1.msra.mxu0 %v284
    %307 = vmatprep.subr.mxu0 0.0
    %308 = vmatpush1.msra.mxu0 %v285
    %309 = vmatprep.subr.mxu0 0.0
    %310 = vmatpush1.msra.mxu0 %v286
    %311 = vmatprep.subr.mxu0 0.0
    %312 = vmatpush1.msra.mxu0 %v287
    %313 = vmatprep.subr.mxu0 0.0
    %314 = vmatpush1.msra.mxu0 0.0
    %315 = vmatprep.subr.mxu0 0.0
    %316 = vmatpush1.msra.mxu0 0.0
    %317 = vmatprep.subr.mxu0 0.0
    %318 = vmatpush1.msra.mxu0 0.0
    %319 = vmatprep.subr.mxu0 0.0
    %320 = vmatpush1.msra.mxu0 0.0
    %321 = vmatprep.subr.mxu0 0.0
    %322 = vmatpush1.msra.mxu0 0.0
    %323 = vmatprep.subr.mxu0 0.0
    %324 = vmatpush1.msra.mxu0 0.0
    %325 = vmatprep.subr.mxu0 0.0
    %326 = vmatpush1.msra.mxu0 0.0
    %327 = vmatprep.subr.mxu0 0.0
    %328 = vmatpush1.msra.mxu0 0.0
    %329 = vmatprep.subr.mxu0 0.0
    %330 = vmatpush1.msra.mxu0 0.0
    %331 = vmatprep.subr.mxu0 0.0
    %332 = vmatpush1.msra.mxu0 0.0
    %333 = vmatprep.subr.mxu0 0.0
    %334 = vmatpush1.msra.mxu0 0.0
    %335 = vmatprep.subr.mxu0 0.0
    %336 = vmatpush1.msra.mxu0 0.0
    %337 = vmatprep.subr.mxu0 0.0
    %338 = vmatpush1.msra.mxu0 0.0
    %339 = vmatprep.subr.mxu0 0.0
    %340 = vmatpush1.msra.mxu0 0.0
    %341 = vmatprep.subr.mxu0 0.0
    %342 = vmatpush1.msra.mxu0 0.0
    %343 = vmatprep.subr.mxu0 0.0
    %344 = vmatpush1.msra.mxu0 0.0
    %345 = vmatprep.subr.mxu0 0.0
    %346 = vmatpush1.msra.mxu0 0.0
    %347 = vmatprep.subr.mxu0 0.0
    %348 = vmatpush1.msra.mxu0 0.0
    %349 = vmatprep.subr.mxu0 0.0
    %350 = vmatpush1.msra.mxu0 0.0
    %351 = vmatprep.subr.mxu0 0.0
    %352 = vmatpush1.msra.mxu0 0.0
    %353 = vmatprep.subr.mxu0 0.0
    %354 = vmatpush1.msra.mxu0 0.0
    %355 = vmatprep.subr.mxu0 0.0
    %356 = vmatpush1.msra.mxu0 0.0
    %357 = vmatprep.subr.mxu0 0.0
    %358 = vmatpush1.msra.mxu0 0.0
    %359 = vmatprep.subr.mxu0 0.0
    %360 = vmatpush1.msra.mxu0 0.0
    %361 = vmatprep.subr.mxu0 0.0
    %362 = vmatpush1.msra.mxu0 0.0
    %363 = vmatprep.subr.mxu0 0.0
    %364 = vmatpush1.msra.mxu0 0.0
    %365 = vmatprep.subr.mxu0 0.0
    %366 = vmatpush1.msra.mxu0 0.0
    %367 = vmatprep.subr.mxu0 0.0
    %368 = vmatpush1.msra.mxu0 0.0
    %369 = vmatprep.mubr.f32.mxu0 0.0
    %370 = vmatmul.mubr.f32.gmra.mrb[0].mxu0 %v297
    %v371 = vpop.f32.mrb[0].mxu0
    %v372 = vadd.f32 %v293, %v371
    %v373 = vpop.f32.mrb[0].mxu0
    %374 = vmatprep.mubr.f32.mxu0 0.0
    %375 = vmatmul.mubr.f32.gmra.mrb[0].mxu0 %v300
    %v376 = vpop.f32.mrb[0].mxu0
    %v377 = vadd.f32 %v293, %v376
    %v378 = vpop.f32.mrb[0].mxu0
    %379 = vmatprep.mubr.f32.mxu0 0.0
    %380 = vmatmul.mubr.f32.gmra.mrb[0].mxu0 %v303
    %v381 = vpop.f32.mrb[0].mxu0
    %v382 = vadd.f32 %v293, %v381
    %v383 = vpop.f32.mrb[0].mxu0
    %384 = vdwg.mxu0
    %v385 = vmax.f32 %v372, 0.0
    %v386 = vmax.f32 %v377, 0.0
    %v387 = vmax.f32 %v382, 0.0
    %v388 = vld [vmem:[%s8] sm:$0xff]
    %v389 = vld [vmem:[%s8 + $0x8] sm:$0xff]
    %v390 = vld [vmem:[%s8 + $0x10] sm:$0xff]
    %v391 = vld [vmem:[%s8 + $0x18] sm:$0xff]
    %v393 = vsel %vm295, %v385, 0
    %v396 = vsel %vm295, %v386, 0
    %v399 = vsel %vm295, %v387, 0
    %401 = vmatprep.subr.mxu0 0.0
    %402 = vmatpush1.msra.mxu0 %v388
    %403 = vmatprep.subr.mxu0 0.0
    %404 = vmatpush1.msra.mxu0 %v389
    %405 = vmatprep.subr.mxu0 0.0
    %406 = vmatpush1.msra.mxu0 %v390
    %407 = vmatprep.subr.mxu0 0.0
    %408 = vmatpush1.msra.mxu0 %v391
    %409 = vmatprep.subr.mxu0 0.0
    %410 = vmatpush1.msra.mxu0 0.0
    %411 = vmatprep.subr.mxu0 0.0
    %412 = vmatpush1.msra.mxu0 0.0
    %413 = vmatprep.subr.mxu0 0.0
    %414 = vmatpush1.msra.mxu0 0.0
    %415 = vmatprep.subr.mxu0 0.0
    %416 = vmatpush1.msra.mxu0 0.0
    %417 = vmatprep.subr.mxu0 0.0
    %418 = vmatpush1.msra.mxu0 0.0
    %419 = vmatprep.subr.mxu0 0.0
    %420 = vmatpush1.msra.mxu0 0.0
    %421 = vmatprep.subr.mxu0 0.0
    %422 = vmatpush1.msra.mxu0 0.0
    %423 = vmatprep.subr.mxu0 0.0
    %424 = vmatpush1.msra.mxu0 0.0
    %425 = vmatprep.subr.mxu0 0.0
    %426 = vmatpush1.msra.mxu0 0.0
    %427 = vmatprep.subr.mxu0 0.0
    %428 = vmatpush1.msra.mxu0 0.0
    %429 = vmatprep.subr.mxu0 0.0
    %430 = vmatpush1.msra.mxu0 0.0
    %431 = vmatprep.subr.mxu0 0.0
    %432 = vmatpush1.msra.mxu0 0.0
    %433 = vmatprep.subr.mxu0 0.0
    %434 = vmatpush1.msra.mxu0 0.0
    %435 = vmatprep.subr.mxu0 0.0
    %436 = vmatpush1.msra.mxu0 0.0
    %437 = vmatprep.subr.mxu0 0.0
    %438 = vmatpush1.msra.mxu0 0.0
    %439 = vmatprep.subr.mxu0 0.0
    %440 = vmatpush1.msra.mxu0 0.0
    %441 = vmatprep.subr.mxu0 0.0
    %442 = vmatpush1.msra.mxu0 0.0
    %443 = vmatprep.subr.mxu0 0.0
    %444 = vmatpush1.msra.mxu0 0.0
    %445 = vmatprep.subr.mxu0 0.0
    %446 = vmatpush1.msra.mxu0 0.0
    %447 = vmatprep.subr.mxu0 0.0
    %448 = vmatpush1.msra.mxu0 0.0
    %449 = vmatprep.subr.mxu0 0.0
    %450 = vmatpush1.msra.mxu0 0.0
    %451 = vmatprep.subr.mxu0 0.0
    %452 = vmatpush1.msra.mxu0 0.0
    %453 = vmatprep.subr.mxu0 0.0
    %454 = vmatpush1.msra.mxu0 0.0
    %455 = vmatprep.subr.mxu0 0.0
    %456 = vmatpush1.msra.mxu0 0.0
    %457 = vmatprep.subr.mxu0 0.0
    %458 = vmatpush1.msra.mxu0 0.0
    %459 = vmatprep.subr.mxu0 0.0
    %460 = vmatpush1.msra.mxu0 0.0
    %461 = vmatprep.subr.mxu0 0.0
    %462 = vmatpush1.msra.mxu0 0.0
    %463 = vmatprep.subr.mxu0 0.0
    %464 = vmatpush1.msra.mxu0 0.0
    %465 = vmatprep.mubr.f32.mxu0 0.0
    %466 = vmatmul.mubr.f32.gmra.mrb[0].mxu0 %v393
    %v467 = vpop.f32.mrb[0].mxu0
    %v468 = vadd.f32 0.0, %v467
    %v469 = vpop.f32.mrb[0].mxu0
    %470 = vmatprep.mubr.f32.mxu0 0.0
    %471 = vmatmul.mubr.f32.gmra.mrb[0].mxu0 %v396
    %v472 = vpop.f32.mrb[0].mxu0
    %v473 = vadd.f32 0.0, %v472
    %v474 = vpop.f32.mrb[0].mxu0
    %475 = vmatprep.mubr.f32.mxu0 0.0
    %476 = vmatmul.mubr.f32.gmra.mrb[0].mxu0 %v399
    %v477 = vpop.f32.mrb[0].mxu0
    %v478 = vadd.f32 0.0, %v477
    %v479 = vpop.f32.mrb[0].mxu0
    %480 = vdwg.mxu0
    %v481 = vld [vmem:[#allocation8] sm:$0xff]
    %v482 = vld [vmem:[#allocation8 + $0x8] sm:$0xff]
    %v483 = vld [vmem:[#allocation8 + $0x10] sm:$0xff]
    %v484 = vld [vmem:[#allocation8 + $0x18] sm:$0xff]
    %v485 = vld [vmem:[#allocation10] sm:$0x1]
    %v487 = vlaneseq
    %v488 = vshrl.u32 %v487, 7
    %v489 = vsub.s32 0, %v488
    %v490 = vrot.slane %v485, %v489
    %492 = vmatprep.subr.mxu0 0.0
    %493 = vmatpush1.msra.mxu0 %v481
    %494 = vmatprep.subr.mxu0 0.0
    %495 = vmatpush1.msra.mxu0 %v482
    %496 = vmatprep.subr.mxu0 0.0
    %497 = vmatpush1.msra.mxu0 %v483
    %498 = vmatprep.subr.mxu0 0.0
    %499 = vmatpush1.msra.mxu0 %v484
    %500 = vmatprep.subr.mxu0 0.0
    %501 = vmatpush1.msra.mxu0 0.0
    %502 = vmatprep.subr.mxu0 0.0
    %503 = vmatpush1.msra.mxu0 0.0
    %504 = vmatprep.subr.mxu0 0.0
    %505 = vmatpush1.msra.mxu0 0.0
    %506 = vmatprep.subr.mxu0 0.0
    %507 = vmatpush1.msra.mxu0 0.0
    %508 = vmatprep.subr.mxu0 0.0
    %509 = vmatpush1.msra.mxu0 0.0
    %510 = vmatprep.subr.mxu0 0.0
    %511 = vmatpush1.msra.mxu0 0.0
    %512 = vmatprep.subr.mxu0 0.0
    %513 = vmatpush1.msra.mxu0 0.0
    %514 = vmatprep.subr.mxu0 0.0
    %515 = vmatpush1.msra.mxu0 0.0
    %516 = vmatprep.subr.mxu0 0.0
    %517 = vmatpush1.msra.mxu0 0.0
    %518 = vmatprep.subr.mxu0 0.0
    %519 = vmatpush1.msra.mxu0 0.0
    %520 = vmatprep.subr.mxu0 0.0
    %521 = vmatpush1.msra.mxu0 0.0
    %522 = vmatprep.subr.mxu0 0.0
    %523 = vmatpush1.msra.mxu0 0.0
    %524 = vmatprep.subr.mxu0 0.0
    %525 = vmatpush1.msra.mxu0 0.0
    %526 = vmatprep.subr.mxu0 0.0
    %527 = vmatpush1.msra.mxu0 0.0
    %528 = vmatprep.subr.mxu0 0.0
    %529 = vmatpush1.msra.mxu0 0.0
    %530 = vmatprep.subr.mxu0 0.0
    %531 = vmatpush1.msra.mxu0 0.0
    %532 = vmatprep.subr.mxu0 0.0
    %533 = vmatpush1.msra.mxu0 0.0
    %534 = vmatprep.subr.mxu0 0.0
    %535 = vmatpush1.msra.mxu0 0.0
    %536 = vmatprep.subr.mxu0 0.0
    %537 = vmatpush1.msra.mxu0 0.0
    %538 = vmatprep.subr.mxu0 0.0
    %539 = vmatpush1.msra.mxu0 0.0
    %540 = vmatprep.subr.mxu0 0.0
    %541 = vmatpush1.msra.mxu0 0.0
    %542 = vmatprep.subr.mxu0 0.0
    %543 = vmatpush1.msra.mxu0 0.0
    %544 = vmatprep.subr.mxu0 0.0
    %545 = vmatpush1.msra.mxu0 0.0
    %546 = vmatprep.subr.mxu0 0.0
    %547 = vmatpush1.msra.mxu0 0.0
    %548 = vmatprep.subr.mxu0 0.0
    %549 = vmatpush1.msra.mxu0 0.0
    %550 = vmatprep.subr.mxu0 0.0
    %551 = vmatpush1.msra.mxu0 0.0
    %552 = vmatprep.subr.mxu0 0.0
    %553 = vmatpush1.msra.mxu0 0.0
    %554 = vmatprep.subr.mxu0 0.0
    %555 = vmatpush1.msra.mxu0 0.0
    %556 = vmatprep.mubr.f32.mxu0 0.0
    %557 = vmatmul.mubr.f32.gmra.mrb[0].mxu0 %v393
    %v558 = vpop.f32.mrb[0].mxu0
    %v559 = vadd.f32 %v490, %v558
    %v560 = vpop.f32.mrb[0].mxu0
    %561 = vmatprep.mubr.f32.mxu0 0.0
    %562 = vmatmul.mubr.f32.gmra.mrb[0].mxu0 %v396
    %v563 = vpop.f32.mrb[0].mxu0
    %v564 = vadd.f32 %v490, %v563
    %v565 = vpop.f32.mrb[0].mxu0
    %566 = vmatprep.mubr.f32.mxu0 0.0
    %567 = vmatmul.mubr.f32.gmra.mrb[0].mxu0 %v399
    %v568 = vpop.f32.mrb[0].mxu0
    %v569 = vadd.f32 %v490, %v568
    %v570 = vpop.f32.mrb[0].mxu0
    %571 = vdwg.mxu0
    %v572 = vld [vmem:[#allocation2] sm:$0xff]
    %v573 = vld [vmem:[#allocation2 + $0x8] sm:$0xff]
    %v574 = vld [vmem:[#allocation2 + $0x10] sm:$0xff]
    %vm575 = vcmask 195584
    %v577 = vsel %vm575, %v572, 0
    %v580 = vsel %vm575, %v573, 0
    %v583 = vsel %vm575, %v574, 0
    %585 = vmatprep.subr.mxu0 0.0
    %586 = vmatpush1.msra.mxu0 %v468
    %587 = vmatprep.subr.mxu0 0.0
    %588 = vmatpush1.msra.mxu0 %v473
    %589 = vmatprep.subr.mxu0 0.0
    %590 = vmatpush1.msra.mxu0 %v478
    %591 = vmatprep.subr.mxu0 0.0
    %592 = vmatpush1.msra.mxu0 0.0
    %593 = vmatprep.subr.mxu0 0.0
    %594 = vmatpush1.msra.mxu0 0.0
    %595 = vmatprep.subr.mxu0 0.0
    %596 = vmatpush1.msra.mxu0 0.0
    %597 = vmatprep.subr.mxu0 0.0
    %598 = vmatpush1.msra.mxu0 0.0
    %599 = vmatprep.subr.mxu0 0.0
    %600 = vmatpush1.msra.mxu0 0.0
    %601 = vmatprep.subr.mxu0 0.0
    %602 = vmatpush1.msra.mxu0 0.0
    %603 = vmatprep.subr.mxu0 0.0
    %604 = vmatpush1.msra.mxu0 0.0
    %605 = vmatprep.subr.mxu0 0.0
    %606 = vmatpush1.msra.mxu0 0.0
    %607 = vmatprep.subr.mxu0 0.0
    %608 = vmatpush1.msra.mxu0 0.0
    %609 = vmatprep.subr.mxu0 0.0
    %610 = vmatpush1.msra.mxu0 0.0
    %611 = vmatprep.subr.mxu0 0.0
    %612 = vmatpush1.msra.mxu0 0.0
    %613 = vmatprep.subr.mxu0 0.0
    %614 = vmatpush1.msra.mxu0 0.0
    %615 = vmatprep.subr.mxu0 0.0
    %616 = vmatpush1.msra.mxu0 0.0
    %617 = vmatprep.subr.mxu0 0.0
    %618 = vmatpush1.msra.mxu0 0.0
    %619 = vmatprep.subr.mxu0 0.0
    %620 = vmatpush1.msra.mxu0 0.0
    %621 = vmatprep.subr.mxu0 0.0
    %622 = vmatpush1.msra.mxu0 0.0
    %623 = vmatprep.subr.mxu0 0.0
    %624 = vmatpush1.msra.mxu0 0.0
    %625 = vmatprep.subr.mxu0 0.0
    %626 = vmatpush1.msra.mxu0 0.0
    %627 = vmatprep.subr.mxu0 0.0
    %628 = vmatpush1.msra.mxu0 0.0
    %629 = vmatprep.subr.mxu0 0.0
    %630 = vmatpush1.msra.mxu0 0.0
    %631 = vmatprep.subr.mxu0 0.0
    %632 = vmatpush1.msra.mxu0 0.0
    %633 = vmatprep.subr.mxu0 0.0
    %634 = vmatpush1.msra.mxu0 0.0
    %635 = vmatprep.subr.mxu0 0.0
    %636 = vmatpush1.msra.mxu0 0.0
    %637 = vmatprep.subr.mxu0 0.0
    %638 = vmatpush1.msra.mxu0 0.0
    %639 = vmatprep.subr.mxu0 0.0
    %640 = vmatpush1.msra.mxu0 0.0
    %641 = vmatprep.subr.mxu0 0.0
    %642 = vmatpush1.msra.mxu0 0.0
    %643 = vmatprep.subr.mxu0 0.0
    %644 = vmatpush1.msra.mxu0 0.0
    %645 = vmatprep.subr.mxu0 0.0
    %646 = vmatpush1.msra.mxu0 0.0
    %647 = vmatprep.subr.mxu0 0.0
    %648 = vmatpush1.msra.mxu0 0.0
    %649 = vmatprep.mubr.f32.mxu0 0.0
    %650 = vmatmul.mubr.f32.gmra.mrb[0].mxu0 %v577
    %v651 = vpop.f32.mrb[0].mxu0
    %v652 = vadd.f32 0.0, %v651
    %v653 = vpop.f32.mrb[0].mxu0
    %654 = vmatprep.mubr.f32.mxu0 0.0
    %655 = vmatmul.mubr.f32.gmra.mrb[0].mxu0 %v580
    %v656 = vpop.f32.mrb[0].mxu0
    %v657 = vadd.f32 0.0, %v656
    %v658 = vpop.f32.mrb[0].mxu0
    %659 = vmatprep.mubr.f32.mxu0 0.0
    %660 = vmatmul.mubr.f32.gmra.mrb[0].mxu0 %v583
    %v661 = vpop.f32.mrb[0].mxu0
    %v662 = vadd.f32 0.0, %v661
    %v663 = vpop.f32.mrb[0].mxu0
    %664 = vdwg.mxu0
    %v665 = vadd.f32 %v559, %v652
    %v666 = vadd.f32 %v564, %v657
    %v667 = vadd.f32 %v569, %v662
    %s668 = scalar_lea.vmem [#allocation2], 24
    %v669 = vld [vmem:[%s668] sm:$0xff]
    %v670 = vld [vmem:[%s668 + $0x8] sm:$0xff]
    %v671 = vld [vmem:[%s668 + $0x10] sm:$0xff]
    %675 = vrot.lane.b32.xlu0 %v468, 96
    %v676 = vpop.permute.xlu0 %675
    %677 = vrot.lane.b32.xlu0 %v473, 96
    %v678 = vpop.permute.xlu0 %677
    %679 = vrot.lane.b32.xlu0 %v478, 96
    %v680 = vpop.permute.xlu0 %679
    %v685 = vsel %vm575, %v669, 0
    %v688 = vsel %vm575, %v670, 0
    %v691 = vsel %vm575, %v671, 0
    %693 = vmatprep.subr.mxu0 0.0
    %694 = vmatpush1.msra.mxu0 %v676
    %695 = vmatprep.subr.mxu0 0.0
    %696 = vmatpush1.msra.mxu0 %v678
    %697 = vmatprep.subr.mxu0 0.0
    %698 = vmatpush1.msra.mxu0 %v680
    %699 = vmatprep.subr.mxu0 0.0
    %700 = vmatpush1.msra.mxu0 0.0
    %701 = vmatprep.subr.mxu0 0.0
    %702 = vmatpush1.msra.mxu0 0.0
    %703 = vmatprep.subr.mxu0 0.0
    %704 = vmatpush1.msra.mxu0 0.0
    %705 = vmatprep.subr.mxu0 0.0
    %706 = vmatpush1.msra.mxu0 0.0
    %707 = vmatprep.subr.mxu0 0.0
    %708 = vmatpush1.msra.mxu0 0.0
    %709 = vmatprep.subr.mxu0 0.0
    %710 = vmatpush1.msra.mxu0 0.0
    %711 = vmatprep.subr.mxu0 0.0
    %712 = vmatpush1.msra.mxu0 0.0
    %713 = vmatprep.subr.mxu0 0.0
    %714 = vmatpush1.msra.mxu0 0.0
    %715 = vmatprep.subr.mxu0 0.0
    %716 = vmatpush1.msra.mxu0 0.0
    %717 = vmatprep.subr.mxu0 0.0
    %718 = vmatpush1.msra.mxu0 0.0
    %719 = vmatprep.subr.mxu0 0.0
    %720 = vmatpush1.msra.mxu0 0.0
    %721 = vmatprep.subr.mxu0 0.0
    %722 = vmatpush1.msra.mxu0 0.0
    %723 = vmatprep.subr.mxu0 0.0
    %724 = vmatpush1.msra.mxu0 0.0
    %725 = vmatprep.subr.mxu0 0.0
    %726 = vmatpush1.msra.mxu0 0.0
    %727 = vmatprep.subr.mxu0 0.0
    %728 = vmatpush1.msra.mxu0 0.0
    %729 = vmatprep.subr.mxu0 0.0
    %730 = vmatpush1.msra.mxu0 0.0
    %731 = vmatprep.subr.mxu0 0.0
    %732 = vmatpush1.msra.mxu0 0.0
    %733 = vmatprep.subr.mxu0 0.0
    %734 = vmatpush1.msra.mxu0 0.0
    %735 = vmatprep.subr.mxu0 0.0
    %736 = vmatpush1.msra.mxu0 0.0
    %737 = vmatprep.subr.mxu0 0.0
    %738 = vmatpush1.msra.mxu0 0.0
    %739 = vmatprep.subr.mxu0 0.0
    %740 = vmatpush1.msra.mxu0 0.0
    %741 = vmatprep.subr.mxu0 0.0
    %742 = vmatpush1.msra.mxu0 0.0
    %743 = vmatprep.subr.mxu0 0.0
    %744 = vmatpush1.msra.mxu0 0.0
    %745 = vmatprep.subr.mxu0 0.0
    %746 = vmatpush1.msra.mxu0 0.0
    %747 = vmatprep.subr.mxu0 0.0
    %748 = vmatpush1.msra.mxu0 0.0
    %749 = vmatprep.subr.mxu0 0.0
    %750 = vmatpush1.msra.mxu0 0.0
    %751 = vmatprep.subr.mxu0 0.0
    %752 = vmatpush1.msra.mxu0 0.0
    %753 = vmatprep.subr.mxu0 0.0
    %754 = vmatpush1.msra.mxu0 0.0
    %755 = vmatprep.subr.mxu0 0.0
    %756 = vmatpush1.msra.mxu0 0.0
    %757 = vmatprep.mubr.f32.mxu0 0.0
    %758 = vmatmul.mubr.f32.gmra.mrb[0].mxu0 %v685
    %v759 = vpop.f32.mrb[0].mxu0
    %v760 = vadd.f32 0.0, %v759
    %v761 = vpop.f32.mrb[0].mxu0
    %762 = vmatprep.mubr.f32.mxu0 0.0
    %763 = vmatmul.mubr.f32.gmra.mrb[0].mxu0 %v688
    %v764 = vpop.f32.mrb[0].mxu0
    %v765 = vadd.f32 0.0, %v764
    %v766 = vpop.f32.mrb[0].mxu0
    %767 = vmatprep.mubr.f32.mxu0 0.0
    %768 = vmatmul.mubr.f32.gmra.mrb[0].mxu0 %v691
    %v769 = vpop.f32.mrb[0].mxu0
    %v770 = vadd.f32 0.0, %v769
    %v771 = vpop.f32.mrb[0].mxu0
    %772 = vdwg.mxu0
    %v773 = vadd.f32 %v665, %v760
    %v774 = vadd.f32 %v666, %v765
    %v775 = vadd.f32 %v667, %v770
    %s776 = scalar_lea.vmem [#allocation2], 48
    %v777 = vld [vmem:[%s776] sm:$0xff]
    %v778 = vld [vmem:[%s776 + $0x8] sm:$0xff]
    %v779 = vld [vmem:[%s776 + $0x10] sm:$0xff]
    %780 = vrot.lane.b32.xlu0 %v468, 64
    %v781 = vpop.permute.xlu0 %780
    %782 = vrot.lane.b32.xlu0 %v473, 64
    %v783 = vpop.permute.xlu0 %782
    %784 = vrot.lane.b32.xlu0 %v478, 64
    %v785 = vpop.permute.xlu0 %784
    %v790 = vsel %vm575, %v777, 0
    %v793 = vsel %vm575, %v778, 0
    %v796 = vsel %vm575, %v779, 0
    %798 = vmatprep.subr.mxu0 0.0
    %799 = vmatpush1.msra.mxu0 %v781
    %800 = vmatprep.subr.mxu0 0.0
    %801 = vmatpush1.msra.mxu0 %v783
    %802 = vmatprep.subr.mxu0 0.0
    %803 = vmatpush1.msra.mxu0 %v785
    %804 = vmatprep.subr.mxu0 0.0
    %805 = vmatpush1.msra.mxu0 0.0
    %806 = vmatprep.subr.mxu0 0.0
    %807 = vmatpush1.msra.mxu0 0.0
    %808 = vmatprep.subr.mxu0 0.0
    %809 = vmatpush1.msra.mxu0 0.0
    %810 = vmatprep.subr.mxu0 0.0
    %811 = vmatpush1.msra.mxu0 0.0
    %812 = vmatprep.subr.mxu0 0.0
    %813 = vmatpush1.msra.mxu0 0.0
    %814 = vmatprep.subr.mxu0 0.0
    %815 = vmatpush1.msra.mxu0 0.0
    %816 = vmatprep.subr.mxu0 0.0
    %817 = vmatpush1.msra.mxu0 0.0
    %818 = vmatprep.subr.mxu0 0.0
    %819 = vmatpush1.msra.mxu0 0.0
    %820 = vmatprep.subr.mxu0 0.0
    %821 = vmatpush1.msra.mxu0 0.0
    %822 = vmatprep.subr.mxu0 0.0
    %823 = vmatpush1.msra.mxu0 0.0
    %824 = vmatprep.subr.mxu0 0.0
    %825 = vmatpush1.msra.mxu0 0.0
    %826 = vmatprep.subr.mxu0 0.0
    %827 = vmatpush1.msra.mxu0 0.0
    %828 = vmatprep.subr.mxu0 0.0
    %829 = vmatpush1.msra.mxu0 0.0
    %830 = vmatprep.subr.mxu0 0.0
    %831 = vmatpush1.msra.mxu0 0.0
    %832 = vmatprep.subr.mxu0 0.0
    %833 = vmatpush1.msra.mxu0 0.0
    %834 = vmatprep.subr.mxu0 0.0
    %835 = vmatpush1.msra.mxu0 0.0
    %836 = vmatprep.subr.mxu0 0.0
    %837 = vmatpush1.msra.mxu0 0.0
    %838 = vmatprep.subr.mxu0 0.0
    %839 = vmatpush1.msra.mxu0 0.0
    %840 = vmatprep.subr.mxu0 0.0
    %841 = vmatpush1.msra.mxu0 0.0
    %842 = vmatprep.subr.mxu0 0.0
    %843 = vmatpush1.msra.mxu0 0.0
    %844 = vmatprep.subr.mxu0 0.0
    %845 = vmatpush1.msra.mxu0 0.0
    %846 = vmatprep.subr.mxu0 0.0
    %847 = vmatpush1.msra.mxu0 0.0
    %848 = vmatprep.subr.mxu0 0.0
    %849 = vmatpush1.msra.mxu0 0.0
    %850 = vmatprep.subr.mxu0 0.0
    %851 = vmatpush1.msra.mxu0 0.0
    %852 = vmatprep.subr.mxu0 0.0
    %853 = vmatpush1.msra.mxu0 0.0
    %854 = vmatprep.subr.mxu0 0.0
    %855 = vmatpush1.msra.mxu0 0.0
    %856 = vmatprep.subr.mxu0 0.0
    %857 = vmatpush1.msra.mxu0 0.0
    %858 = vmatprep.subr.mxu0 0.0
    %859 = vmatpush1.msra.mxu0 0.0
    %860 = vmatprep.subr.mxu0 0.0
    %861 = vmatpush1.msra.mxu0 0.0
    %862 = vmatprep.mubr.f32.mxu0 0.0
    %863 = vmatmul.mubr.f32.gmra.mrb[0].mxu0 %v790
    %v864 = vpop.f32.mrb[0].mxu0
    %v865 = vadd.f32 0.0, %v864
    %v866 = vpop.f32.mrb[0].mxu0
    %867 = vmatprep.mubr.f32.mxu0 0.0
    %868 = vmatmul.mubr.f32.gmra.mrb[0].mxu0 %v793
    %v869 = vpop.f32.mrb[0].mxu0
    %v870 = vadd.f32 0.0, %v869
    %v871 = vpop.f32.mrb[0].mxu0
    %872 = vmatprep.mubr.f32.mxu0 0.0
    %873 = vmatmul.mubr.f32.gmra.mrb[0].mxu0 %v796
    %v874 = vpop.f32.mrb[0].mxu0
    %v875 = vadd.f32 0.0, %v874
    %v876 = vpop.f32.mrb[0].mxu0
    %877 = vdwg.mxu0
    %v878 = vadd.f32 %v773, %v865
    %v879 = vadd.f32 %v774, %v870
    %v880 = vadd.f32 %v775, %v875
    %v881 = vld [vmem:[#allocation11] sm:$0xff]
    %v882 = vld [vmem:[#allocation11 + $0x8] sm:$0xff]
    %v883 = vld [vmem:[#allocation11 + $0x10] sm:$0xff]
    %v884 = vld [vmem:[#allocation11 + $0x18] sm:$0xff]
    %v885 = vld [vmem:[#allocation13] sm:$0x1]
    %v887 = vlaneseq
    %v888 = vshrl.u32 %v887, 7
    %v889 = vsub.s32 0, %v888
    %v890 = vrot.slane %v885, %v889
    %v893 = vsel %vm295, %v878, 0
    %v896 = vsel %vm295, %v879, 0
    %v899 = vsel %vm295, %v880, 0
    %901 = vmatprep.subr.mxu0 0.0
    %902 = vmatpush1.msra.mxu0 %v881
    %903 = vmatprep.subr.mxu0 0.0
    %904 = vmatpush1.msra.mxu0 %v882
    %905 = vmatprep.subr.mxu0 0.0
    %906 = vmatpush1.msra.mxu0 %v883
    %907 = vmatprep.subr.mxu0 0.0
    %908 = vmatpush1.msra.mxu0 %v884
    %909 = vmatprep.subr.mxu0 0.0
    %910 = vmatpush1.msra.mxu0 0.0
    %911 = vmatprep.subr.mxu0 0.0
    %912 = vmatpush1.msra.mxu0 0.0
    %913 = vmatprep.subr.mxu0 0.0
    %914 = vmatpush1.msra.mxu0 0.0
    %915 = vmatprep.subr.mxu0 0.0
    %916 = vmatpush1.msra.mxu0 0.0
    %917 = vmatprep.subr.mxu0 0.0
    %918 = vmatpush1.msra.mxu0 0.0
    %919 = vmatprep.subr.mxu0 0.0
    %920 = vmatpush1.msra.mxu0 0.0
    %921 = vmatprep.subr.mxu0 0.0
    %922 = vmatpush1.msra.mxu0 0.0
    %923 = vmatprep.subr.mxu0 0.0
    %924 = vmatpush1.msra.mxu0 0.0
    %925 = vmatprep.subr.mxu0 0.0
    %926 = vmatpush1.msra.mxu0 0.0
    %927 = vmatprep.subr.mxu0 0.0
    %928 = vmatpush1.msra.mxu0 0.0
    %929 = vmatprep.subr.mxu0 0.0
    %930 = vmatpush1.msra.mxu0 0.0
    %931 = vmatprep.subr.mxu0 0.0
    %932 = vmatpush1.msra.mxu0 0.0
    %933 = vmatprep.subr.mxu0 0.0
    %934 = vmatpush1.msra.mxu0 0.0
    %935 = vmatprep.subr.mxu0 0.0
    %936 = vmatpush1.msra.mxu0 0.0
    %937 = vmatprep.subr.mxu0 0.0
    %938 = vmatpush1.msra.mxu0 0.0
    %939 = vmatprep.subr.mxu0 0.0
    %940 = vmatpush1.msra.mxu0 0.0
    %941 = vmatprep.subr.mxu0 0.0
    %942 = vmatpush1.msra.mxu0 0.0
    %943 = vmatprep.subr.mxu0 0.0
    %944 = vmatpush1.msra.mxu0 0.0
    %945 = vmatprep.subr.mxu0 0.0
    %946 = vmatpush1.msra.mxu0 0.0
    %947 = vmatprep.subr.mxu0 0.0
    %948 = vmatpush1.msra.mxu0 0.0
    %949 = vmatprep.subr.mxu0 0.0
    %950 = vmatpush1.msra.mxu0 0.0
    %951 = vmatprep.subr.mxu0 0.0
    %952 = vmatpush1.msra.mxu0 0.0
    %953 = vmatprep.subr.mxu0 0.0
    %954 = vmatpush1.msra.mxu0 0.0
    %955 = vmatprep.subr.mxu0 0.0
    %956 = vmatpush1.msra.mxu0 0.0
    %957 = vmatprep.subr.mxu0 0.0
    %958 = vmatpush1.msra.mxu0 0.0
    %959 = vmatprep.subr.mxu0 0.0
    %960 = vmatpush1.msra.mxu0 0.0
    %961 = vmatprep.subr.mxu0 0.0
    %962 = vmatpush1.msra.mxu0 0.0
    %963 = vmatprep.subr.mxu0 0.0
    %964 = vmatpush1.msra.mxu0 0.0
    %965 = vmatprep.mubr.f32.mxu0 0.0
    %966 = vmatmul.mubr.f32.gmra.mrb[0].mxu0 %v893
    %v967 = vpop.f32.mrb[0].mxu0
    %v968 = vadd.f32 %v890, %v967
    %v969 = vpop.f32.mrb[0].mxu0
    %970 = vmatprep.mubr.f32.mxu0 0.0
    %971 = vmatmul.mubr.f32.gmra.mrb[0].mxu0 %v896
    %v972 = vpop.f32.mrb[0].mxu0
    %v973 = vadd.f32 %v890, %v972
    %v974 = vpop.f32.mrb[0].mxu0
    %975 = vmatprep.mubr.f32.mxu0 0.0
    %976 = vmatmul.mubr.f32.gmra.mrb[0].mxu0 %v899
    %v977 = vpop.f32.mrb[0].mxu0
    %v978 = vadd.f32 %v890, %v977
    %v979 = vpop.f32.mrb[0].mxu0
    %980 = vdwg.mxu0
    %v981 = vmax.f32 %v968, 0.0
    %v982 = vmax.f32 %v973, 0.0
    %v983 = vmax.f32 %v978, 0.0
    %v984 = vld [vmem:[%s13] sm:$0xff]
    %v985 = vld [vmem:[%s13 + $0x8] sm:$0xff]
    %v986 = vld [vmem:[%s13 + $0x10] sm:$0xff]
    %v987 = vld [vmem:[%s13 + $0x18] sm:$0xff]
    %v988 = vld [vmem:[%s14] sm:$0x1]
    %v990 = vlaneseq
    %v991 = vshrl.u32 %v990, 7
    %v992 = vsub.s32 0, %v991
    %v993 = vrot.slane %v988, %v992
    %v996 = vsel %vm295, %v981, 0
    %v999 = vsel %vm295, %v982, 0
    %v1002 = vsel %vm295, %v983, 0
    %1004 = vmatprep.subr.mxu0 0.0
    %1005 = vmatpush1.msra.mxu0 %v984
    %1006 = vmatprep.subr.mxu0 0.0
    %1007 = vmatpush1.msra.mxu0 %v985
    %1008 = vmatprep.subr.mxu0 0.0
    %1009 = vmatpush1.msra.mxu0 %v986
    %1010 = vmatprep.subr.mxu0 0.0
    %1011 = vmatpush1.msra.mxu0 %v987
    %1012 = vmatprep.subr.mxu0 0.0
    %1013 = vmatpush1.msra.mxu0 0.0
    %1014 = vmatprep.subr.mxu0 0.0
    %1015 = vmatpush1.msra.mxu0 0.0
    %1016 = vmatprep.subr.mxu0 0.0
    %1017 = vmatpush1.msra.mxu0 0.0
    %1018 = vmatprep.subr.mxu0 0.0
    %1019 = vmatpush1.msra.mxu0 0.0
    %1020 = vmatprep.subr.mxu0 0.0
    %1021 = vmatpush1.msra.mxu0 0.0
    %1022 = vmatprep.subr.mxu0 0.0
    %1023 = vmatpush1.msra.mxu0 0.0
    %1024 = vmatprep.subr.mxu0 0.0
    %1025 = vmatpush1.msra.mxu0 0.0
    %1026 = vmatprep.subr.mxu0 0.0
    %1027 = vmatpush1.msra.mxu0 0.0
    %1028 = vmatprep.subr.mxu0 0.0
    %1029 = vmatpush1.msra.mxu0 0.0
    %1030 = vmatprep.subr.mxu0 0.0
    %1031 = vmatpush1.msra.mxu0 0.0
    %1032 = vmatprep.subr.mxu0 0.0
    %1033 = vmatpush1.msra.mxu0 0.0
    %1034 = vmatprep.subr.mxu0 0.0
    %1035 = vmatpush1.msra.mxu0 0.0
    %1036 = vmatprep.subr.mxu0 0.0
    %1037 = vmatpush1.msra.mxu0 0.0
    %1038 = vmatprep.subr.mxu0 0.0
    %1039 = vmatpush1.msra.mxu0 0.0
    %1040 = vmatprep.subr.mxu0 0.0
    %1041 = vmatpush1.msra.mxu0 0.0
    %1042 = vmatprep.subr.mxu0 0.0
    %1043 = vmatpush1.msra.mxu0 0.0
    %1044 = vmatprep.subr.mxu0 0.0
    %1045 = vmatpush1.msra.mxu0 0.0
    %1046 = vmatprep.subr.mxu0 0.0
    %1047 = vmatpush1.msra.mxu0 0.0
    %1048 = vmatprep.subr.mxu0 0.0
    %1049 = vmatpush1.msra.mxu0 0.0
    %1050 = vmatprep.subr.mxu0 0.0
    %1051 = vmatpush1.msra.mxu0 0.0
    %1052 = vmatprep.subr.mxu0 0.0
    %1053 = vmatpush1.msra.mxu0 0.0
    %1054 = vmatprep.subr.mxu0 0.0
    %1055 = vmatpush1.msra.mxu0 0.0
    %1056 = vmatprep.subr.mxu0 0.0
    %1057 = vmatpush1.msra.mxu0 0.0
    %1058 = vmatprep.subr.mxu0 0.0
    %1059 = vmatpush1.msra.mxu0 0.0
    %1060 = vmatprep.subr.mxu0 0.0
    %1061 = vmatpush1.msra.mxu0 0.0
    %1062 = vmatprep.subr.mxu0 0.0
    %1063 = vmatpush1.msra.mxu0 0.0
    %1064 = vmatprep.subr.mxu0 0.0
    %1065 = vmatpush1.msra.mxu0 0.0
    %1066 = vmatprep.subr.mxu0 0.0
    %1067 = vmatpush1.msra.mxu0 0.0
    %1068 = vmatprep.mubr.f32.mxu0 0.0
    %1069 = vmatmul.mubr.f32.gmra.mrb[0].mxu0 %v996
    %v1070 = vpop.f32.mrb[0].mxu0
    %v1071 = vadd.f32 %v993, %v1070
    %v1072 = vpop.f32.mrb[0].mxu0
    %1073 = vmatprep.mubr.f32.mxu0 0.0
    %1074 = vmatmul.mubr.f32.gmra.mrb[0].mxu0 %v999
    %v1075 = vpop.f32.mrb[0].mxu0
    %v1076 = vadd.f32 %v993, %v1075
    %v1077 = vpop.f32.mrb[0].mxu0
    %1078 = vmatprep.mubr.f32.mxu0 0.0
    %1079 = vmatmul.mubr.f32.gmra.mrb[0].mxu0 %v1002
    %v1080 = vpop.f32.mrb[0].mxu0
    %v1081 = vadd.f32 %v993, %v1080
    %v1082 = vpop.f32.mrb[0].mxu0
    %1083 = vdwg.mxu0
    %v1084 = vmax.f32 %v1071, 0.0
    %v1085 = vmax.f32 %v1076, 0.0
    %v1086 = vmax.f32 %v1081, 0.0
    %v1087 = vld [vmem:[#allocation5] sm:$0xff]
    %v1089 = vsel %vm575, %v1087, 0
    %1091 = vmatprep.subr.mxu0 0.0
    %1092 = vmatpush1.msra.mxu0 %v385
    %1093 = vmatprep.subr.mxu0 0.0
    %1094 = vmatpush1.msra.mxu0 %v386
    %1095 = vmatprep.subr.mxu0 0.0
    %1096 = vmatpush1.msra.mxu0 %v387
    %1097 = vmatprep.subr.mxu0 0.0
    %1098 = vmatpush1.msra.mxu0 0.0
    %1099 = vmatprep.subr.mxu0 0.0
    %1100 = vmatpush1.msra.mxu0 0.0
    %1101 = vmatprep.subr.mxu0 0.0
    %1102 = vmatpush1.msra.mxu0 0.0
    %1103 = vmatprep.subr.mxu0 0.0
    %1104 = vmatpush1.msra.mxu0 0.0
    %1105 = vmatprep.subr.mxu0 0.0
    %1106 = vmatpush1.msra.mxu0 0.0
    %1107 = vmatprep.subr.mxu0 0.0
    %1108 = vmatpush1.msra.mxu0 0.0
    %1109 = vmatprep.subr.mxu0 0.0
    %1110 = vmatpush1.msra.mxu0 0.0
    %1111 = vmatprep.subr.mxu0 0.0
    %1112 = vmatpush1.msra.mxu0 0.0
    %1113 = vmatprep.subr.mxu0 0.0
    %1114 = vmatpush1.msra.mxu0 0.0
    %1115 = vmatprep.subr.mxu0 0.0
    %1116 = vmatpush1.msra.mxu0 0.0
    %1117 = vmatprep.subr.mxu0 0.0
    %1118 = vmatpush1.msra.mxu0 0.0
    %1119 = vmatprep.subr.mxu0 0.0
    %1120 = vmatpush1.msra.mxu0 0.0
    %1121 = vmatprep.subr.mxu0 0.0
    %1122 = vmatpush1.msra.mxu0 0.0
    %1123 = vmatprep.subr.mxu0 0.0
    %1124 = vmatpush1.msra.mxu0 0.0
    %1125 = vmatprep.subr.mxu0 0.0
    %1126 = vmatpush1.msra.mxu0 0.0
    %1127 = vmatprep.subr.mxu0 0.0
    %1128 = vmatpush1.msra.mxu0 0.0
    %1129 = vmatprep.subr.mxu0 0.0
    %1130 = vmatpush1.msra.mxu0 0.0
    %1131 = vmatprep.subr.mxu0 0.0
    %1132 = vmatpush1.msra.mxu0 0.0
    %1133 = vmatprep.subr.mxu0 0.0
    %1134 = vmatpush1.msra.mxu0 0.0
    %1135 = vmatprep.subr.mxu0 0.0
    %1136 = vmatpush1.msra.mxu0 0.0
    %1137 = vmatprep.subr.mxu0 0.0
    %1138 = vmatpush1.msra.mxu0 0.0
    %1139 = vmatprep.subr.mxu0 0.0
    %1140 = vmatpush1.msra.mxu0 0.0
    %1141 = vmatprep.subr.mxu0 0.0
    %1142 = vmatpush1.msra.mxu0 0.0
    %1143 = vmatprep.subr.mxu0 0.0
    %1144 = vmatpush1.msra.mxu0 0.0
    %1145 = vmatprep.subr.mxu0 0.0
    %1146 = vmatpush1.msra.mxu0 0.0
    %1147 = vmatprep.subr.mxu0 0.0
    %1148 = vmatpush1.msra.mxu0 0.0
    %1149 = vmatprep.subr.mxu0 0.0
    %1150 = vmatpush1.msra.mxu0 0.0
    %1151 = vmatprep.subr.mxu0 0.0
    %1152 = vmatpush1.msra.mxu0 0.0
    %1153 = vmatprep.subr.mxu0 0.0
    %1154 = vmatpush1.msra.mxu0 0.0
    %1155 = vmatprep.mubr.f32.mxu0 0.0
    %1156 = vmatmul.mubr.f32.gmra.mrb[0].mxu0 %v1089
    %v1157 = vpop.f32.mrb[0].mxu0
    %v1158 = vadd.f32 0.0, %v1157
    %v1159 = vpop.f32.mrb[0].mxu0
    %1160 = vdwg.mxu0
    %1161 = vmatprep.subr.mxu0 0.0
    %1162 = vmatpush1.msra.mxu0 %v1084
    %1163 = vmatprep.subr.mxu0 0.0
    %1164 = vmatpush1.msra.mxu0 %v1085
    %1165 = vmatprep.subr.mxu0 0.0
    %1166 = vmatpush1.msra.mxu0 %v1086
    %1167 = vmatprep.subr.mxu0 0.0
    %1168 = vmatpush1.msra.mxu0 0.0
    %1169 = vmatprep.subr.mxu0 0.0
    %1170 = vmatpush1.msra.mxu0 0.0
    %1171 = vmatprep.subr.mxu0 0.0
    %1172 = vmatpush1.msra.mxu0 0.0
    %1173 = vmatprep.subr.mxu0 0.0
    %1174 = vmatpush1.msra.mxu0 0.0
    %1175 = vmatprep.subr.mxu0 0.0
    %1176 = vmatpush1.msra.mxu0 0.0
    %1177 = vmatprep.subr.mxu0 0.0
    %1178 = vmatpush1.msra.mxu0 0.0
    %1179 = vmatprep.subr.mxu0 0.0
    %1180 = vmatpush1.msra.mxu0 0.0
    %1181 = vmatprep.subr.mxu0 0.0
    %1182 = vmatpush1.msra.mxu0 0.0
    %1183 = vmatprep.subr.mxu0 0.0
    %1184 = vmatpush1.msra.mxu0 0.0
    %1185 = vmatprep.subr.mxu0 0.0
    %1186 = vmatpush1.msra.mxu0 0.0
    %1187 = vmatprep.subr.mxu0 0.0
    %1188 = vmatpush1.msra.mxu0 0.0
    %1189 = vmatprep.subr.mxu0 0.0
    %1190 = vmatpush1.msra.mxu0 0.0
    %1191 = vmatprep.subr.mxu0 0.0
    %1192 = vmatpush1.msra.mxu0 0.0
    %1193 = vmatprep.subr.mxu0 0.0
    %1194 = vmatpush1.msra.mxu0 0.0
    %1195 = vmatprep.subr.mxu0 0.0
    %1196 = vmatpush1.msra.mxu0 0.0
    %1197 = vmatprep.subr.mxu0 0.0
    %1198 = vmatpush1.msra.mxu0 0.0
    %1199 = vmatprep.subr.mxu0 0.0
    %1200 = vmatpush1.msra.mxu0 0.0
    %1201 = vmatprep.subr.mxu0 0.0
    %1202 = vmatpush1.msra.mxu0 0.0
    %1203 = vmatprep.subr.mxu0 0.0
    %1204 = vmatpush1.msra.mxu0 0.0
    %1205 = vmatprep.subr.mxu0 0.0
    %1206 = vmatpush1.msra.mxu0 0.0
    %1207 = vmatprep.subr.mxu0 0.0
    %1208 = vmatpush1.msra.mxu0 0.0
    %1209 = vmatprep.subr.mxu0 0.0
    %1210 = vmatpush1.msra.mxu0 0.0
    %1211 = vmatprep.subr.mxu0 0.0
    %1212 = vmatpush1.msra.mxu0 0.0
    %1213 = vmatprep.subr.mxu0 0.0
    %1214 = vmatpush1.msra.mxu0 0.0
    %1215 = vmatprep.subr.mxu0 0.0
    %1216 = vmatpush1.msra.mxu0 0.0
    %1217 = vmatprep.subr.mxu0 0.0
    %1218 = vmatpush1.msra.mxu0 0.0
    %1219 = vmatprep.subr.mxu0 0.0
    %1220 = vmatpush1.msra.mxu0 0.0
    %1221 = vmatprep.subr.mxu0 0.0
    %1222 = vmatpush1.msra.mxu0 0.0
    %1223 = vmatprep.subr.mxu0 0.0
    %1224 = vmatpush1.msra.mxu0 0.0
    %1225 = vmatprep.mubr.f32.mxu0 0.0
    %1226 = vmatmul.mubr.f32.gmra.mrb[0].mxu0 %v1089
    %v1227 = vpop.f32.mrb[0].mxu0
    %v1228 = vadd.f32 0.0, %v1227
    %v1229 = vpop.f32.mrb[0].mxu0
    %1230 = vdwg.mxu0
    %v1231 = vld [vmem:[#allocation14] sm:$0xff]
    %v1232 = vld [vmem:[#allocation14 + $0x8] sm:$0xff]
    %v1233 = vld [vmem:[#allocation14 + $0x10] sm:$0xff]
    %v1234 = vld [vmem:[#allocation14 + $0x18] sm:$0xff]
    %v1235 = vld [vmem:[%s3] sm:$0xff]
    %v1236 = vld [vmem:[%s16] sm:$0x1]
    %1238 = vset.pattern.permute.xlu0 0
    %1239 = vperm.xlu0 %1238, %v1235
    %v1240 = vpop.permute.xlu0 %1239
    %v1243 = vlaneseq
    %v1244 = vshrl.u32 %v1243, 7
    %v1245 = vsub.s32 0, %v1244
    %v1246 = vrot.slane %v1236, %v1245
    %v1248 = vmul.f32 %v1240, %v1246
    %v1250 = vsel %vm295, %v1158, 0
    %1252 = vmatprep.subr.mxu0 0.0
    %1253 = vmatpush1.msra.mxu0 %v1231
    %1254 = vmatprep.subr.mxu0 0.0
    %1255 = vmatpush1.msra.mxu0 %v1232
    %1256 = vmatprep.subr.mxu0 0.0
    %1257 = vmatpush1.msra.mxu0 %v1233
    %1258 = vmatprep.subr.mxu0 0.0
    %1259 = vmatpush1.msra.mxu0 %v1234
    %1260 = vmatprep.subr.mxu0 0.0
    %1261 = vmatpush1.msra.mxu0 0.0
    %1262 = vmatprep.subr.mxu0 0.0
    %1263 = vmatpush1.msra.mxu0 0.0
    %1264 = vmatprep.subr.mxu0 0.0
    %1265 = vmatpush1.msra.mxu0 0.0
    %1266 = vmatprep.subr.mxu0 0.0
    %1267 = vmatpush1.msra.mxu0 0.0
    %1268 = vmatprep.subr.mxu0 0.0
    %1269 = vmatpush1.msra.mxu0 0.0
    %1270 = vmatprep.subr.mxu0 0.0
    %1271 = vmatpush1.msra.mxu0 0.0
    %1272 = vmatprep.subr.mxu0 0.0
    %1273 = vmatpush1.msra.mxu0 0.0
    %1274 = vmatprep.subr.mxu0 0.0
    %1275 = vmatpush1.msra.mxu0 0.0
    %1276 = vmatprep.subr.mxu0 0.0
    %1277 = vmatpush1.msra.mxu0 0.0
    %1278 = vmatprep.subr.mxu0 0.0
    %1279 = vmatpush1.msra.mxu0 0.0
    %1280 = vmatprep.subr.mxu0 0.0
    %1281 = vmatpush1.msra.mxu0 0.0
    %1282 = vmatprep.subr.mxu0 0.0
    %1283 = vmatpush1.msra.mxu0 0.0
    %1284 = vmatprep.subr.mxu0 0.0
    %1285 = vmatpush1.msra.mxu0 0.0
    %1286 = vmatprep.subr.mxu0 0.0
    %1287 = vmatpush1.msra.mxu0 0.0
    %1288 = vmatprep.subr.mxu0 0.0
    %1289 = vmatpush1.msra.mxu0 0.0
    %1290 = vmatprep.subr.mxu0 0.0
    %1291 = vmatpush1.msra.mxu0 0.0
    %1292 = vmatprep.subr.mxu0 0.0
    %1293 = vmatpush1.msra.mxu0 0.0
    %1294 = vmatprep.subr.mxu0 0.0
    %1295 = vmatpush1.msra.mxu0 0.0
    %1296 = vmatprep.subr.mxu0 0.0
    %1297 = vmatpush1.msra.mxu0 0.0
    %1298 = vmatprep.subr.mxu0 0.0
    %1299 = vmatpush1.msra.mxu0 0.0
    %1300 = vmatprep.subr.mxu0 0.0
    %1301 = vmatpush1.msra.mxu0 0.0
    %1302 = vmatprep.subr.mxu0 0.0
    %1303 = vmatpush1.msra.mxu0 0.0
    %1304 = vmatprep.subr.mxu0 0.0
    %1305 = vmatpush1.msra.mxu0 0.0
    %1306 = vmatprep.subr.mxu0 0.0
    %1307 = vmatpush1.msra.mxu0 0.0
    %1308 = vmatprep.subr.mxu0 0.0
    %1309 = vmatpush1.msra.mxu0 0.0
    %1310 = vmatprep.subr.mxu0 0.0
    %1311 = vmatpush1.msra.mxu0 0.0
    %1312 = vmatprep.subr.mxu0 0.0
    %1313 = vmatpush1.msra.mxu0 0.0
    %1314 = vmatprep.subr.mxu0 0.0
    %1315 = vmatpush1.msra.mxu0 0.0
    %1316 = vmatprep.mubr.f32.mxu0 0.0
    %1317 = vmatmul.mubr.f32.gmra.mrb[0].mxu0 %v1250
    %v1318 = vpop.f32.mrb[0].mxu0
    %v1319 = vadd.f32 %v1248, %v1318
    %v1320 = vpop.f32.mrb[0].mxu0
    %1321 = vdwg.mxu0
    %v1322 = vld [vmem:[#allocation16] sm:$0xff]
    %v1323 = vld [vmem:[#allocation16 + $0x8] sm:$0xff]
    %v1324 = vld [vmem:[#allocation16 + $0x10] sm:$0xff]
    %v1325 = vld [vmem:[#allocation16 + $0x18] sm:$0xff]
    %v1327 = vsel %vm295, %v1228, 0
    %1329 = vmatprep.subr.mxu0 0.0
    %1330 = vmatpush1.msra.mxu0 %v1322
    %1331 = vmatprep.subr.mxu0 0.0
    %1332 = vmatpush1.msra.mxu0 %v1323
    %1333 = vmatprep.subr.mxu0 0.0
    %1334 = vmatpush1.msra.mxu0 %v1324
    %1335 = vmatprep.subr.mxu0 0.0
    %1336 = vmatpush1.msra.mxu0 %v1325
    %1337 = vmatprep.subr.mxu0 0.0
    %1338 = vmatpush1.msra.mxu0 0.0
    %1339 = vmatprep.subr.mxu0 0.0
    %1340 = vmatpush1.msra.mxu0 0.0
    %1341 = vmatprep.subr.mxu0 0.0
    %1342 = vmatpush1.msra.mxu0 0.0
    %1343 = vmatprep.subr.mxu0 0.0
    %1344 = vmatpush1.msra.mxu0 0.0
    %1345 = vmatprep.subr.mxu0 0.0
    %1346 = vmatpush1.msra.mxu0 0.0
    %1347 = vmatprep.subr.mxu0 0.0
    %1348 = vmatpush1.msra.mxu0 0.0
    %1349 = vmatprep.subr.mxu0 0.0
    %1350 = vmatpush1.msra.mxu0 0.0
    %1351 = vmatprep.subr.mxu0 0.0
    %1352 = vmatpush1.msra.mxu0 0.0
    %1353 = vmatprep.subr.mxu0 0.0
    %1354 = vmatpush1.msra.mxu0 0.0
    %1355 = vmatprep.subr.mxu0 0.0
    %1356 = vmatpush1.msra.mxu0 0.0
    %1357 = vmatprep.subr.mxu0 0.0
    %1358 = vmatpush1.msra.mxu0 0.0
    %1359 = vmatprep.subr.mxu0 0.0
    %1360 = vmatpush1.msra.mxu0 0.0
    %1361 = vmatprep.subr.mxu0 0.0
    %1362 = vmatpush1.msra.mxu0 0.0
    %1363 = vmatprep.subr.mxu0 0.0
    %1364 = vmatpush1.msra.mxu0 0.0
    %1365 = vmatprep.subr.mxu0 0.0
    %1366 = vmatpush1.msra.mxu0 0.0
    %1367 = vmatprep.subr.mxu0 0.0
    %1368 = vmatpush1.msra.mxu0 0.0
    %1369 = vmatprep.subr.mxu0 0.0
    %1370 = vmatpush1.msra.mxu0 0.0
    %1371 = vmatprep.subr.mxu0 0.0
    %1372 = vmatpush1.msra.mxu0 0.0
    %1373 = vmatprep.subr.mxu0 0.0
    %1374 = vmatpush1.msra.mxu0 0.0
    %1375 = vmatprep.subr.mxu0 0.0
    %1376 = vmatpush1.msra.mxu0 0.0
    %1377 = vmatprep.subr.mxu0 0.0
    %1378 = vmatpush1.msra.mxu0 0.0
    %1379 = vmatprep.subr.mxu0 0.0
    %1380 = vmatpush1.msra.mxu0 0.0
    %1381 = vmatprep.subr.mxu0 0.0
    %1382 = vmatpush1.msra.mxu0 0.0
    %1383 = vmatprep.subr.mxu0 0.0
    %1384 = vmatpush1.msra.mxu0 0.0
    %1385 = vmatprep.subr.mxu0 0.0
    %1386 = vmatpush1.msra.mxu0 0.0
    %1387 = vmatprep.subr.mxu0 0.0
    %1388 = vmatpush1.msra.mxu0 0.0
    %1389 = vmatprep.subr.mxu0 0.0
    %1390 = vmatpush1.msra.mxu0 0.0
    %1391 = vmatprep.subr.mxu0 0.0
    %1392 = vmatpush1.msra.mxu0 0.0
    %1393 = vmatprep.mubr.f32.mxu0 0.0
    %1394 = vmatmul.mubr.f32.gmra.mrb[0].mxu0 %v1327
    %v1395 = vpop.f32.mrb[0].mxu0
    %v1396 = vadd.f32 0.0, %v1395
    %v1397 = vpop.f32.mrb[0].mxu0
    %1398 = vdwg.mxu0
    %v1399 = vadd.f32 %v1319, %v1396
    %v1400 = vld [vmem:[%s18] sm:$0x1]
    %v1402 = vlaneseq
    %v1403 = vshrl.u32 %v1402, 7
    %v1404 = vsub.s32 0, %v1403
    %v1405 = vrot.slane %v1400, %v1404
    %v1407 = vadd.f32 %v1399, %v1405
    %v1408 = vlaneseq
    %v1409 = vand.u32 %v1408, 127
    %vm1410 = vcmp.lt.s32.totalorder %v1409, 4
    %v1411 = vsel %vm1410, %v1407, -inf
    %1412 = vmax.xlane.f32.xlu0 %v1411
    %v1413 = vpop.xlane.xlu0 %1412
    %v1414 = vsub.f32 %v1411, %v1413
    %v1415 = vmul.f32 %v1414, 1.442695
    %v1416 = vpow.pop %v1415
    %1417 = vadd.xlane.f32.xlu0 %v1416
    %v1418 = vpop.xlane.xlu0 %1417
    %v1419 = vlog2.pop %v1418
    %v1420 = vmul.f32 %v1419, 0.6931472
    %v1421 = vadd.f32 %v1420, %v1413
    %v1422 = vsub.f32 %v1411, %v1421
    %1423 = vst [vmem:[#allocation17] sm:$0xff] %v1422
    // Predicated region
    $region114: #{tpu_custom_call.1} parent=1 // pred_check
      _
    $region115: #{tpu_custom_call.1} parent=1 // pred_check_branch
      %1425 = sbr.rel (0) target = $region117
    $region116: #{tpu_custom_call.1} parent=1 // pred_region
      %s1427 = ssub.s32 128, 128
      %1428 = vsyncadd [#allocation4], %s1427
      %s1430 = sshll.u32 [#allocation17], 4
      %s1431 = int_to_ptr.vmem [resolvable:$true] %s1430
      %1433 = dma.vmem_to_hbm [thread:$0]  %s1431, 128, %s19, [#allocation4]
    $region117: #{tpu_custom_call.1} parent=1 // pred_fallthru
      _
    // Predicated region
    $region118: #{tpu_custom_call.1} parent=1 // pred_check
      _
    $region119: #{tpu_custom_call.1} parent=1 // pred_check_branch
      %1435 = sbr.rel (0) target = $region121
    $region120: #{tpu_custom_call.1} parent=1 // pred_region
      %1436 = dma.done [#allocation4], 128
    $region121: #{tpu_custom_call.1} parent=1 // pred_fallthru
      _
    %1437 = vsyncpa [#allocation3], 1
    %1438 = vsyncpa [#allocation6], 1
    %1439 = vsyncpa [#allocation9], 1
    %1440 = vsyncpa [#allocation12], 1
    %1441 = vsyncpa [#allocation15], 1
    %1442 = vsyncpa [#allocation4], 1

</llo_original>
